<compile_context>
chip_gen: v6e
topology: v6e:2x2x1
jax: 0.10.0
libtpu: 0.0.40
codegen_flags: <defaults>
</compile_context>

<pallas_src>
import functools

import jax
import jax.numpy as jnp
from jax import lax
from jax.experimental import pallas as pl
from jax.experimental.pallas import tpu as pltpu

MY_INF = 1.0e12          # matches the PyTorch module's mask fill value
LN_EPS = 1e-5            # nn.LayerNorm default eps


def _round_up(x, m):
    return ((x + m - 1) // m) * m


def _choose_tff(d_ff):
    """Pick a d_ff tile: keep resident when small, else a 128-multiple divisor."""
    if d_ff <= 2048:
        return d_ff
    for cand in (2048, 1024, 512, 256, 128):
        if d_ff % cand == 0:
            return cand
    return d_ff


def _cparams(semantics):
    return pltpu.CompilerParams(
        dimension_semantics=semantics,
        vmem_limit_bytes=48 * 1024 * 1024,
    )


def _layernorm_f32(z, g, b):
    mu = jnp.mean(z, axis=-1, keepdims=True)
    zc = z - mu
    var = jnp.mean(zc * zc, axis=-1, keepdims=True)
    return zc * lax.rsqrt(var + LN_EPS) * g + b


# --------------------------------------------------------------------------
# Kernels
# --------------------------------------------------------------------------
def _linear_kernel(x_ref, w_ref, b_ref, o_ref):
    """y = x @ w + b on one (tm, d_in) row tile. Used for the fused QKV proj."""
    acc = jnp.dot(x_ref[...], w_ref[...], preferred_element_type=jnp.float32)
    acc = acc + b_ref[...].astype(jnp.float32)
    o_ref[...] = acc.astype(o_ref.dtype)


def _attn_body(q, k, v, mask, o_ref):
    # scores / softmax / weighted sum for one (batch, head) slice.
    d_k = q.shape[-1]
    s = jnp.dot(q, k.T, preferred_element_type=jnp.float32) / (d_k ** 0.5)
    if mask is not None:
        s = jnp.where(mask != 0, -MY_INF, s)
    s = s - jnp.max(s, axis=-1, keepdims=True)
    p = jnp.exp(s)
    p = p / jnp.sum(p, axis=-1, keepdims=True)
    o_ref[0] = jnp.dot(p.astype(v.dtype), v,
                       preferred_element_type=jnp.float32).astype(o_ref.dtype)


def _attention_kernel(q_ref, k_ref, v_ref, o_ref):
    # TODO(synk): flash-style kv tiling for long sequences; full-seq per head here.
    _attn_body(q_ref[0], k_ref[0], v_ref[0], None, o_ref)


def _attention_masked_kernel(q_ref, k_ref, v_ref, m_ref, o_ref):
    _attn_body(q_ref[0], k_ref[0], v_ref[0], m_ref[0], o_ref)


def _out_proj_ln_kernel(c_ref, w_ref, b_ref, res_ref, g_ref, beta_ref, o_ref):
    """x1 = LayerNorm(res + (c @ w_out + b_out)); dropout is eval-mode identity."""
    y = jnp.dot(c_ref[...], w_ref[...], preferred_element_type=jnp.float32)
    z = y + b_ref[...].astype(jnp.float32) + res_ref[...].astype(jnp.float32)
    o_ref[...] = _layernorm_f32(
        z, g_ref[...].astype(jnp.float32), beta_ref[...].astype(jnp.float32)
    ).astype(o_ref.dtype)


def _ffn_residual_ln_kernel(x_ref, w1_ref, b1_ref, w2_ref, b2_ref,
                            g_ref, beta_ref, o_ref, acc_ref):
    """out = LayerNorm(x + (relu(x@w1+b1) @ w2 + b2)), d_ff tiled on grid axis 1."""
    ff = pl.program_id(1)

    @pl.when(ff == 0)
    def _():
        acc_ref[...] = jnp.zeros_like(acc_ref)

    # First linear (native dtype -> f32 accumulate) + bias + ReLU on (tm, tff).
    h = jnp.dot(x_ref[...], w1_ref[...], preferred_element_type=jnp.float32)
    h = jnp.maximum(h + b1_ref[...].astype(jnp.float32), 0.0)
    # TODO(synk): training-mode dropout here; eval-mode identity.

    # Partial second linear, accumulated over the d_ff axis in f32 VMEM.
    acc_ref[...] += jnp.dot(h.astype(w2_ref.dtype), w2_ref[...],
                            preferred_element_type=jnp.float32)

    @pl.when(ff == pl.num_programs(1) - 1)
    def _():
        z = (acc_ref[...] + b2_ref[...].astype(jnp.float32)
             + x_ref[...].astype(jnp.float32))          # + residual (b2 only once)
        o_ref[...] = _layernorm_f32(
            z, g_ref[...].astype(jnp.float32), beta_ref[...].astype(jnp.float32)
        ).astype(o_ref.dtype)


# --------------------------------------------------------------------------
# Wrapper
# --------------------------------------------------------------------------
@functools.partial(jax.jit, static_argnames=("heads", "tm_target"))
def encoder_layer(x, params, heads, mask=None, *, tm_target=256):
    """x: (batch, seq, d_model) -> (batch, seq, d_model). Eval-mode EncoderLayer."""
    n, L, d_model = x.shape
    assert d_model % heads == 0
    d_k = d_model // heads
    d_ff = params["w1"].shape[1]
    dtype = x.dtype
    itemsize = jnp.dtype(dtype).itemsize

    M = n * L
    # Row tile: MXU-friendly target, but never larger than (padded) M; keep
    # M_pad//tm >= 2 on real shapes so both v7x TensorCores get work.
    tm = min(tm_target, _round_up(M, 8))
    m_pad = _round_up(M, tm)
    tff = _choose_tff(d_ff)
    n_ff = d_ff // tff

    x2d = x.reshape(M, d_model)
    x2d_p = jnp.pad(x2d, ((0, m_pad - M), (0, 0))) if m_pad != M else x2d

    # ---- fused QKV projection (one MXU pass over a (d_model, 3*d_model) weight)
    w_qkv = jnp.concatenate([params["wq"], params["wk"], params["wv"]], axis=1)
    b_qkv = jnp.concatenate(
        [params["bq"], params["bk"], params["bv"]]).reshape(1, 3 * d_model)

    qkv = pl.pallas_call(
        _linear_kernel,
        out_shape=jax.ShapeDtypeStruct((m_pad, 3 * d_model), dtype),
        grid_spec=pltpu.PrefetchScalarGridSpec(
            num_scalar_prefetch=0,
            grid=(m_pad // tm,),
            in_specs=[
                pl.BlockSpec((tm, d_model), lambda i: (i, 0)),
                pl.BlockSpec((d_model, 3 * d_model), lambda i: (0, 0)),
                pl.BlockSpec((1, 3 * d_model), lambda i: (0, 0)),
            ],
            out_specs=pl.BlockSpec((tm, 3 * d_model), lambda i: (i, 0)),
        ),
        compiler_params=_cparams(("parallel",)),
        cost_estimate=pl.CostEstimate(
            flops=2 * m_pad * d_model * 3 * d_model,
            transcendentals=0,
            bytes_accessed=(m_pad * d_model + 3 * d_model * d_model
                            + m_pad * 3 * d_model) * itemsize,
        ),
    )(x2d_p, w_qkv, b_qkv)

    qkv = qkv[:M]

    def split_heads(t):  # (M, d_model) -> (n*heads, L, d_k)
        return t.reshape(n, L, heads, d_k).transpose(0, 2, 1, 3).reshape(
            n * heads, L, d_k)

    q_ = split_heads(qkv[:, 0:d_model])
    k_ = split_heads(qkv[:, d_model:2 * d_model])
    v_ = split_heads(qkv[:, 2 * d_model:3 * d_model])

    # ---- scaled dot-product attention, one (batch, head) per grid step ------
    attn_inputs = [q_, k_, v_]
    attn_specs = [
        pl.BlockSpec((1, L, d_k), lambda i: (i, 0, 0)),
        pl.BlockSpec((1, L, d_k), lambda i: (i, 0, 0)),
        pl.BlockSpec((1, L, d_k), lambda i: (i, 0, 0)),
    ]
    if mask is None:
        attn_kernel = _attention_kernel
    else:
        attn_kernel = _attention_masked_kernel
        m4 = jnp.broadcast_to(mask, (n, heads, L, L)).astype(jnp.float32)
        attn_inputs.append(m4.reshape(n * heads, L, L))
        attn_specs.append(pl.BlockSpec((1, L, L), lambda i: (i, 0, 0)))

    attn = pl.pallas_call(
        attn_kernel,
        out_shape=jax.ShapeDtypeStruct((n * heads, L, d_k), dtype),
        grid_spec=pltpu.PrefetchScalarGridSpec(
            num_scalar_prefetch=0,
            grid=(n * heads,),
            in_specs=attn_specs,
            out_specs=pl.BlockSpec((1, L, d_k), lambda i: (i, 0, 0)),
        ),
        compiler_params=_cparams(("parallel",)),
    )(*attn_inputs)

    # concat heads back to (M, d_model)
    c2d = attn.reshape(n, heads, L, d_k).transpose(0, 2, 1, 3).reshape(M, d_model)
    c2d_p = jnp.pad(c2d, ((0, m_pad - M), (0, 0))) if m_pad != M else c2d

    # ---- output projection + residual + LayerNorm1 --------------------------
    x1 = pl.pallas_call(
        _out_proj_ln_kernel,
        out_shape=jax.ShapeDtypeStruct((m_pad, d_model), dtype),
        grid_spec=pltpu.PrefetchScalarGridSpec(
            num_scalar_prefetch=0,
            grid=(m_pad // tm,),
            in_specs=[
                pl.BlockSpec((tm, d_model), lambda i: (i, 0)),        # attn concat
                pl.BlockSpec((d_model, d_model), lambda i: (0, 0)),   # w_out
                pl.BlockSpec((1, d_model), lambda i: (0, 0)),         # b_out
                pl.BlockSpec((tm, d_model), lambda i: (i, 0)),        # residual x
                pl.BlockSpec((1, d_model), lambda i: (0, 0)),         # gamma1
                pl.BlockSpec((1, d_model), lambda i: (0, 0)),         # beta1
            ],
            out_specs=pl.BlockSpec((tm, d_model), lambda i: (i, 0)),
        ),
        compiler_params=_cparams(("parallel",)),
        cost_estimate=pl.CostEstimate(
            flops=2 * m_pad * d_model * d_model,
            transcendentals=0,
            bytes_accessed=(3 * m_pad * d_model + d_model * d_model) * itemsize,
        ),
    )(c2d_p, params["wo"], params["bo"].reshape(1, d_model), x2d_p,
      params["g1"].reshape(1, d_model), params["beta1"].reshape(1, d_model))

    # ---- FFN (d_ff tiled, f32 accumulator) + residual + LayerNorm2 -----------
    out2d = pl.pallas_call(
        _ffn_residual_ln_kernel,
        out_shape=jax.ShapeDtypeStruct((m_pad, d_model), dtype),
        grid_spec=pltpu.PrefetchScalarGridSpec(
            num_scalar_prefetch=0,
            grid=(m_pad // tm, n_ff),
            in_specs=[
                pl.BlockSpec((tm, d_model), lambda i, f: (i, 0)),     # x1 (and residual)
                pl.BlockSpec((d_model, tff), lambda i, f: (0, f)),    # w1 tile
                pl.BlockSpec((1, tff), lambda i, f: (0, f)),          # b1 tile
                pl.BlockSpec((tff, d_model), lambda i, f: (f, 0)),    # w2 tile
                pl.BlockSpec((1, d_model), lambda i, f: (0, 0)),      # b2
                pl.BlockSpec((1, d_model), lambda i, f: (0, 0)),      # gamma2
                pl.BlockSpec((1, d_model), lambda i, f: (0, 0)),      # beta2
            ],
            out_specs=pl.BlockSpec((tm, d_model), lambda i, f: (i, 0)),
            scratch_shapes=[pltpu.VMEM((tm, d_model), jnp.float32)],
        ),
        compiler_params=_cparams(("parallel", "arbitrary")),
        cost_estimate=pl.CostEstimate(
            flops=4 * m_pad * d_model * d_ff,
            transcendentals=0,
            bytes_accessed=(2 * m_pad * d_model + 2 * d_model * d_ff) * itemsize,
        ),
    )(x1, params["w1"], params["b1"].reshape(1, d_ff),
      params["w2"], params["b2"].reshape(1, d_model),
      params["g2"].reshape(1, d_model), params["beta2"].reshape(1, d_model))

    return out2d[:M].reshape(n, L, d_model)


# --------------------------------------------------------------------------
# Pure-JAX reference (eval-mode dropout == identity)
# --------------------------------------------------------------------------
def encoder_layer_ref(x, params, heads, mask=None):
    n, L, d_model = x.shape
    d_k = d_model // heads

    def ln(z, g, b):
        mu = jnp.mean(z, axis=-1, keepdims=True)
        zc = z - mu
        var = jnp.mean(zc * zc, axis=-1, keepdims=True)
        return zc / jnp.sqrt(var + LN_EPS) * g + b

    q = x @ params["wq"] + params["bq"]
    k = x @ params["wk"] + params["bk"]
    v = x @ params["wv"] + params["bv"]

    def split(t):
        return t.reshape(n, L, heads, d_k).transpose(0, 2, 1, 3)

    q_, k_, v_ = split(q), split(k), split(v)
    s = jnp.einsum("nhqd,nhkd->nhqk", q_, k_) / (d_k ** 0.5)
    if mask is not None:
        s = jnp.where(mask, -MY_INF, s)
    p = jax.nn.softmax(s, axis=-1)
    a = jnp.einsum("nhqk,nhkd->nhqd", p, v_)
    a = a.transpose(0, 2, 1, 3).reshape(n, L, d_model)
    a = a @ params["wo"] + params["bo"]
    x1 = ln(x + a, params["g1"], params["beta1"])
    h = jnp.maximum(x1 @ params["w1"] + params["b1"], 0.0)
    f = h @ params["w2"] + params["b2"]
    return ln(x1 + f, params["g2"], params["beta2"])


if __name__ == "__main__":
    # Small shapes consistent with the module: (batch, seq, d_model), heads, d_ff.
    batch, seq, d_model, heads, d_ff = 2, 8, 32, 4, 64

    key = jax.random.PRNGKey(0)
    keys = jax.random.split(key, 17)

    def init(k, shape, scale=0.05):
        return jax.random.normal(k, shape, dtype=jnp.float32) * scale

    x = jax.random.normal(keys[0], (batch, seq, d_model), dtype=jnp.float32)
    # Deterministic synthetic parameters (math-style weights: (d_in, d_out)).
    params = {
        "wq": init(keys[1], (d_model, d_model)), "bq": init(keys[2], (d_model,)),
        "wk": init(keys[3], (d_model, d_model)), "bk": init(keys[4], (d_model,)),
        "wv": init(keys[5], (d_model, d_model)), "bv": init(keys[6], (d_model,)),
        "wo": init(keys[7], (d_model, d_model)), "bo": init(keys[8], (d_model,)),
        "w1": init(keys[9], (d_model, d_ff)),    "b1": init(keys[10], (d_ff,)),
        "w2": init(keys[11], (d_ff, d_model)),   "b2": init(keys[12], (d_model,)),
        "g1": 1.0 + init(keys[13], (d_model,), 0.1), "beta1": init(keys[14], (d_model,)),
        "g2": 1.0 + init(keys[15], (d_model,), 0.1), "beta2": init(keys[16], (d_model,)),
    }

    # No mask
    out = jax.block_until_ready(encoder_layer(x, params, heads=heads))
    ref = encoder_layer_ref(x, params, heads)
    assert out.shape == x.shape
    assert jnp.allclose(out, ref, atol=1e-4, rtol=1e-4)

    # Boolean padding-style mask (masks the last key position).
    src_mask = jnp.zeros((batch, 1, 1, seq), dtype=bool).at[:, :, :, -1].set(True)
    out_m = jax.block_until_ready(encoder_layer(x, params, heads=heads, mask=src_mask))
    ref_m = encoder_layer_ref(x, params, heads, src_mask)
    assert jnp.allclose(out_m, ref_m, atol=1e-4, rtol=1e-4)

    print("KERNEL_OK")
</pallas_src>

<mosaic_0001>
module attributes {stable_mosaic.version = 11 : i64} {
  func.func @_linear_kernel(%arg0: i32, %arg1: memref<16x32xf32, #tpu.memory_space<vmem>>, %arg2: memref<32x96xf32, #tpu.memory_space<vmem>>, %arg3: memref<1x96xf32, #tpu.memory_space<vmem>>, %arg4: memref<16x96xf32, #tpu.memory_space<vmem>>) attributes {dimension_semantics = [#tpu.dimension_semantics<parallel>], iteration_bounds = array<i64: 1>, scalar_prefetch = 0 : i64, scratch_operands = 0 : i64, tpu.core_type = #tpu.core_type<tc>, window_params = [{transform_indices = @transform_0, window_bounds = array<i64: 16, 32>}, {pipeline_mode = #tpu.pipeline_mode<synchronous>, transform_indices = @transform_1, window_bounds = array<i64: 32, 96>}, {pipeline_mode = #tpu.pipeline_mode<synchronous>, transform_indices = @transform_2, window_bounds = array<i64: 1, 96>}, {transform_indices = @transform_3, window_bounds = array<i64: 16, 96>}]} {
    %c0 = arith.constant 0 : index
    %c0_0 = arith.constant 0 : index
    %0 = vector.load %arg1[%c0, %c0_0] : memref<16x32xf32, #tpu.memory_space<vmem>>, vector<16x32xf32>
    %c0_1 = arith.constant 0 : index
    %c0_2 = arith.constant 0 : index
    %1 = vector.load %arg2[%c0_1, %c0_2] : memref<32x96xf32, #tpu.memory_space<vmem>>, vector<32x96xf32>
    %cst = arith.constant dense<0.000000e+00> : vector<16x96xf32>
    %2 = tpu.matmul %0, %1, %cst {dimension_numbers = #tpu.dot_dimension_numbers<[1], [0], [0], [1], [0, 0, 1, 1], [], []>} : vector<16x32xf32>, vector<32x96xf32>, vector<16x96xf32> -> vector<16x96xf32>
    %c0_3 = arith.constant 0 : index
    %c0_4 = arith.constant 0 : index
    %3 = vector.load %arg3[%c0_3, %c0_4] : memref<1x96xf32, #tpu.memory_space<vmem>>, vector<1x96xf32>
    %4 = vector.broadcast %3 : vector<1x96xf32> to vector<16x96xf32>
    %5 = arith.addf %2, %4 : vector<16x96xf32>
    %c0_5 = arith.constant 0 : index
    %c0_6 = arith.constant 0 : index
    %6 = vector.load %arg4[%c0_5, %c0_6] : memref<16x96xf32, #tpu.memory_space<vmem>>, vector<16x96xf32>
    tpu.vector_store %arg4[%c0_5, %c0_6], %5 {strides = array<i32>} : memref<16x96xf32, #tpu.memory_space<vmem>>, vector<16x96xf32>,
    return
  }
  func.func @transform_0(%arg0: i32) -> (i32, i32) {
    %c0_i32 = arith.constant 0 : i32
    %c0_i32_0 = arith.constant 0 : i32
    return %arg0, %c0_i32 : i32, i32
  }
  func.func @transform_1(%arg0: i32) -> (i32, i32) {
    %c0_i32 = arith.constant 0 : i32
    %c0_i32_0 = arith.constant 0 : i32
    %c0_i32_1 = arith.constant 0 : i32
    return %c0_i32, %c0_i32_0 : i32, i32
  }
  func.func @transform_2(%arg0: i32) -> (i32, i32) {
    %c0_i32 = arith.constant 0 : i32
    %c0_i32_0 = arith.constant 0 : i32
    %c0_i32_1 = arith.constant 0 : i32
    return %c0_i32, %c0_i32_0 : i32, i32
  }
  func.func @transform_3(%arg0: i32) -> (i32, i32) {
    %c0_i32 = arith.constant 0 : i32
    %c0_i32_0 = arith.constant 0 : i32
    return %arg0, %c0_i32 : i32, i32
  }
}

module attributes {stable_mosaic.version = 11 : i64} {
  func.func @_attention_kernel(%arg0: i32, %arg1: memref<1x8x8xf32, #tpu.memory_space<vmem>>, %arg2: memref<1x8x8xf32, #tpu.memory_space<vmem>>, %arg3: memref<1x8x8xf32, #tpu.memory_space<vmem>>, %arg4: memref<1x8x8xf32, #tpu.memory_space<vmem>>) attributes {dimension_semantics = [#tpu.dimension_semantics<parallel>], iteration_bounds = array<i64: 8>, scalar_prefetch = 0 : i64, scratch_operands = 0 : i64, tpu.core_type = #tpu.core_type<tc>, window_params = [{transform_indices = @transform_0, window_bounds = array<i64: 1, 8, 8>}, {transform_indices = @transform_1, window_bounds = array<i64: 1, 8, 8>}, {transform_indices = @transform_2, window_bounds = array<i64: 1, 8, 8>}, {transform_indices = @transform_3, window_bounds = array<i64: 1, 8, 8>}]} {
    %c0 = arith.constant 0 : index
    %c0_0 = arith.constant 0 : index
    %c0_1 = arith.constant 0 : index
    %0 = vector.load %arg1[%c0, %c0_0, %c0_1] : memref<1x8x8xf32, #tpu.memory_space<vmem>>, vector<1x8x8xf32>
    %1 = vector.shape_cast %0 : vector<1x8x8xf32> to vector<8x8xf32>
    %c0_2 = arith.constant 0 : index
    %c0_3 = arith.constant 0 : index
    %c0_4 = arith.constant 0 : index
    %2 = vector.load %arg2[%c0_2, %c0_3, %c0_4] : memref<1x8x8xf32, #tpu.memory_space<vmem>>, vector<1x8x8xf32>
    %3 = vector.shape_cast %2 : vector<1x8x8xf32> to vector<8x8xf32>
    %c0_5 = arith.constant 0 : index
    %c0_6 = arith.constant 0 : index
    %c0_7 = arith.constant 0 : index
    %4 = vector.load %arg3[%c0_5, %c0_6, %c0_7] : memref<1x8x8xf32, #tpu.memory_space<vmem>>, vector<1x8x8xf32>
    %5 = vector.shape_cast %4 : vector<1x8x8xf32> to vector<8x8xf32>
    %6 = tpu.transpose %3, [1, 0] : vector<8x8xf32> -> vector<8x8xf32>
    %cst = arith.constant dense<0.000000e+00> : vector<8x8xf32>
    %7 = tpu.matmul %1, %6, %cst {dimension_numbers = #tpu.dot_dimension_numbers<[1], [0], [0], [1], [0, 0, 1, 1], [], []>} : vector<8x8xf32>, vector<8x8xf32>, vector<8x8xf32> -> vector<8x8xf32>
    %cst_8 = arith.constant 2.82842708 : f32
    %8 = vector.broadcast %cst_8 : f32 to vector<8x8xf32>
    %9 = arith.divf %7, %8 : vector<8x8xf32>
    %cst_9 = arith.constant dense<0xFF800000> : vector<8xf32>
    %10 = vector.multi_reduction <maximumf>, %9, %cst_9 [1] : vector<8x8xf32> to vector<8xf32>
    %11 = vector.shape_cast %10 : vector<8xf32> to vector<8x1xf32>
    %12 = vector.broadcast %11 : vector<8x1xf32> to vector<8x8xf32>
    %13 = arith.subf %9, %12 : vector<8x8xf32>
    %14 = math.exp %13 : vector<8x8xf32>
    %cst_10 = arith.constant dense<0.000000e+00> : vector<8xf32>
    %15 = vector.multi_reduction <add>, %14, %cst_10 [1] : vector<8x8xf32> to vector<8xf32>
    %16 = vector.shape_cast %15 : vector<8xf32> to vector<8x1xf32>
    %17 = vector.broadcast %16 : vector<8x1xf32> to vector<8x8xf32>
    %18 = arith.divf %14, %17 : vector<8x8xf32>
    %cst_11 = arith.constant dense<0.000000e+00> : vector<8x8xf32>
    %19 = tpu.matmul %18, %5, %cst_11 {dimension_numbers = #tpu.dot_dimension_numbers<[1], [0], [0], [1], [0, 0, 1, 1], [], []>} : vector<8x8xf32>, vector<8x8xf32>, vector<8x8xf32> -> vector<8x8xf32>
    %c0_12 = arith.constant 0 : index
    %c0_13 = arith.constant 0 : index
    %c0_14 = arith.constant 0 : index
    %20 = vector.load %arg4[%c0_12, %c0_13, %c0_14] : memref<1x8x8xf32, #tpu.memory_space<vmem>>, vector<1x8x8xf32>
    %21 = vector.shape_cast %20 : vector<1x8x8xf32> to vector<8x8xf32>
    %22 = vector.shape_cast %19 : vector<8x8xf32> to vector<1x8x8xf32>
    tpu.vector_store %arg4[%c0_12, %c0_13, %c0_14], %22 {strides = array<i32>} : memref<1x8x8xf32, #tpu.memory_space<vmem>>, vector<1x8x8xf32>,
    return
  }
  func.func @transform_0(%arg0: i32) -> (i32, i32, i32) {
    %c0_i32 = arith.constant 0 : i32
    %c0_i32_0 = arith.constant 0 : i32
    %c0_i32_1 = arith.constant 0 : i32
    return %arg0, %c0_i32, %c0_i32_0 : i32, i32, i32
  }
  func.func @transform_1(%arg0: i32) -> (i32, i32, i32) {
    %c0_i32 = arith.constant 0 : i32
    %c0_i32_0 = arith.constant 0 : i32
    %c0_i32_1 = arith.constant 0 : i32
    return %arg0, %c0_i32, %c0_i32_0 : i32, i32, i32
  }
  func.func @transform_2(%arg0: i32) -> (i32, i32, i32) {
    %c0_i32 = arith.constant 0 : i32
    %c0_i32_0 = arith.constant 0 : i32
    %c0_i32_1 = arith.constant 0 : i32
    return %arg0, %c0_i32, %c0_i32_0 : i32, i32, i32
  }
  func.func @transform_3(%arg0: i32) -> (i32, i32, i32) {
    %c0_i32 = arith.constant 0 : i32
    %c0_i32_0 = arith.constant 0 : i32
    %c0_i32_1 = arith.constant 0 : i32
    return %arg0, %c0_i32, %c0_i32_0 : i32, i32, i32
  }
}

module attributes {stable_mosaic.version = 11 : i64} {
  func.func @_ffn_residual_ln_kernel(%arg0: i32, %arg1: i32, %arg2: memref<16x32xf32, #tpu.memory_space<vmem>>, %arg3: memref<32x64xf32, #tpu.memory_space<vmem>>, %arg4: memref<1x64xf32, #tpu.memory_space<vmem>>, %arg5: memref<64x32xf32, #tpu.memory_space<vmem>>, %arg6: memref<1x32xf32, #tpu.memory_space<vmem>>, %arg7: memref<1x32xf32, #tpu.memory_space<vmem>>, %arg8: memref<1x32xf32, #tpu.memory_space<vmem>>, %arg9: memref<16x32xf32, #tpu.memory_space<vmem>>, %arg10: memref<16x32xf32, #tpu.memory_space<vmem>>) attributes {dimension_semantics = [#tpu.dimension_semantics<parallel>, #tpu.dimension_semantics<arbitrary>], iteration_bounds = array<i64: 1, 1>, scalar_prefetch = 0 : i64, scratch_operands = 1 : i64, tpu.core_type = #tpu.core_type<tc>, window_params = [{transform_indices = @transform_0, window_bounds = array<i64: 16, 32>}, {transform_indices = @transform_1, window_bounds = array<i64: 32, 64>}, {transform_indices = @transform_2, window_bounds = array<i64: 1, 64>}, {transform_indices = @transform_3, window_bounds = array<i64: 64, 32>}, {pipeline_mode = #tpu.pipeline_mode<synchronous>, transform_indices = @transform_4, window_bounds = array<i64: 1, 32>}, {pipeline_mode = #tpu.pipeline_mode<synchronous>, transform_indices = @transform_5, window_bounds = array<i64: 1, 32>}, {pipeline_mode = #tpu.pipeline_mode<synchronous>, transform_indices = @transform_6, window_bounds = array<i64: 1, 32>}, {transform_indices = @transform_7, window_bounds = array<i64: 16, 32>}]} {
    %c0_i32 = arith.constant 0 : i32
    %0 = arith.cmpi eq, %arg1, %c0_i32 : i32
    %1 = arith.extui %0 : i1 to i32
    %c0_i32_0 = arith.constant 0 : i32
    %2 = arith.cmpi ne, %1, %c0_i32_0 : i32
    scf.if %2 {
      %cst_16 = arith.constant 0.000000e+00 : f32
      %19 = vector.broadcast %cst_16 : f32 to vector<16x32xf32>
      %c0_17 = arith.constant 0 : index
      %c0_18 = arith.constant 0 : index
      %20 = vector.load %arg10[%c0_17, %c0_18] : memref<16x32xf32, #tpu.memory_space<vmem>>, vector<16x32xf32>
      tpu.vector_store %arg10[%c0_17, %c0_18], %19 {strides = array<i32>} : memref<16x32xf32, #tpu.memory_space<vmem>>, vector<16x32xf32>,
    } else {
    }
    %c0 = arith.constant 0 : index
    %c0_1 = arith.constant 0 : index
    %3 = vector.load %arg2[%c0, %c0_1] : memref<16x32xf32, #tpu.memory_space<vmem>>, vector<16x32xf32>
    %c0_2 = arith.constant 0 : index
    %c0_3 = arith.constant 0 : index
    %4 = vector.load %arg3[%c0_2, %c0_3] : memref<32x64xf32, #tpu.memory_space<vmem>>, vector<32x64xf32>
    %cst = arith.constant dense<0.000000e+00> : vector<16x64xf32>
    %5 = tpu.matmul %3, %4, %cst {dimension_numbers = #tpu.dot_dimension_numbers<[1], [0], [0], [1], [0, 0, 1, 1], [], []>} : vector<16x32xf32>, vector<32x64xf32>, vector<16x64xf32> -> vector<16x64xf32>
    %c0_4 = arith.constant 0 : index
    %c0_5 = arith.constant 0 : index
    %6 = vector.load %arg4[%c0_4, %c0_5] : memref<1x64xf32, #tpu.memory_space<vmem>>, vector<1x64xf32>
    %7 = vector.broadcast %6 : vector<1x64xf32> to vector<16x64xf32>
    %8 = arith.addf %5, %7 : vector<16x64xf32>
    %cst_6 = arith.constant 0.000000e+00 : f32
    %9 = vector.broadcast %cst_6 : f32 to vector<16x64xf32>
    %10 = arith.maximumf %8, %9 : vector<16x64xf32>
    %c0_7 = arith.constant 0 : index
    %c0_8 = arith.constant 0 : index
    %11 = vector.load %arg10[%c0_7, %c0_8] : memref<16x32xf32, #tpu.memory_space<vmem>>, vector<16x32xf32>
    %c0_9 = arith.constant 0 : index
    %c0_10 = arith.constant 0 : index
    %12 = vector.load %arg5[%c0_9, %c0_10] : memref<64x32xf32, #tpu.memory_space<vmem>>, vector<64x32xf32>
    %cst_11 = arith.constant dense<0.000000e+00> : vector<16x32xf32>
    %13 = tpu.matmul %10, %12, %cst_11 {dimension_numbers = #tpu.dot_dimension_numbers<[1], [0], [0], [1], [0, 0, 1, 1], [], []>} : vector<16x64xf32>, vector<64x32xf32>, vector<16x32xf32> -> vector<16x32xf32>
    %14 = arith.addf %11, %13 : vector<16x32xf32>
    %c0_12 = arith.constant 0 : index
    %c0_13 = arith.constant 0 : index
    %15 = vector.load %arg10[%c0_12, %c0_13] : memref<16x32xf32, #tpu.memory_space<vmem>>, vector<16x32xf32>
    tpu.vector_store %arg10[%c0_12, %c0_13], %14 {strides = array<i32>} : memref<16x32xf32, #tpu.memory_space<vmem>>, vector<16x32xf32>,
    %c0_i32_14 = arith.constant 0 : i32
    %16 = arith.cmpi eq, %arg1, %c0_i32_14 : i32
    %17 = arith.extui %16 : i1 to i32
    %c0_i32_15 = arith.constant 0 : i32
    %18 = arith.cmpi ne, %17, %c0_i32_15 : i32
    scf.if %18 {
      %c0_16 = arith.constant 0 : index
      %c0_17 = arith.constant 0 : index
      %19 = vector.load %arg10[%c0_16, %c0_17] : memref<16x32xf32, #tpu.memory_space<vmem>>, vector<16x32xf32>
      %c0_18 = arith.constant 0 : index
      %c0_19 = arith.constant 0 : index
      %20 = vector.load %arg6[%c0_18, %c0_19] : memref<1x32xf32, #tpu.memory_space<vmem>>, vector<1x32xf32>
      %21 = vector.broadcast %20 : vector<1x32xf32> to vector<16x32xf32>
      %22 = arith.addf %19, %21 : vector<16x32xf32>
      %c0_20 = arith.constant 0 : index
      %c0_21 = arith.constant 0 : index
      %23 = vector.load %arg2[%c0_20, %c0_21] : memref<16x32xf32, #tpu.memory_space<vmem>>, vector<16x32xf32>
      %24 = arith.addf %22, %23 : vector<16x32xf32>
      %c0_22 = arith.constant 0 : index
      %c0_23 = arith.constant 0 : index
      %25 = vector.load %arg7[%c0_22, %c0_23] : memref<1x32xf32, #tpu.memory_space<vmem>>, vector<1x32xf32>
      %c0_24 = arith.constant 0 : index
      %c0_25 = arith.constant 0 : index
      %26 = vector.load %arg8[%c0_24, %c0_25] : memref<1x32xf32, #tpu.memory_space<vmem>>, vector<1x32xf32>
      %cst_26 = arith.constant dense<0.000000e+00> : vector<16xf32>
      %27 = vector.multi_reduction <add>, %24, %cst_26 [1] : vector<16x32xf32> to vector<16xf32>
      %28 = vector.shape_cast %27 : vector<16xf32> to vector<16x1xf32>
      %cst_27 = arith.constant 3.200000e+01 : f32
      %29 = vector.broadcast %cst_27 : f32 to vector<16x1xf32>
      %30 = arith.divf %28, %29 : vector<16x1xf32>
      %31 = vector.broadcast %30 : vector<16x1xf32> to vector<16x32xf32>
      %32 = arith.subf %24, %31 : vector<16x32xf32>
      %33 = arith.mulf %32, %32 : vector<16x32xf32>
      %cst_28 = arith.constant dense<0.000000e+00> : vector<16xf32>
      %34 = vector.multi_reduction <add>, %33, %cst_28 [1] : vector<16x32xf32> to vector<16xf32>
      %35 = vector.shape_cast %34 : vector<16xf32> to vector<16x1xf32>
      %cst_29 = arith.constant 3.200000e+01 : f32
      %36 = vector.broadcast %cst_29 : f32 to vector<16x1xf32>
      %37 = arith.divf %35, %36 : vector<16x1xf32>
      %cst_30 = arith.constant 9.99999974E-6 : f32
      %38 = vector.broadcast %cst_30 : f32 to vector<16x1xf32>
      %39 = arith.addf %37, %38 : vector<16x1xf32>
      %40 = math.rsqrt %39 : vector<16x1xf32>
      %41 = vector.broadcast %40 : vector<16x1xf32> to vector<16x32xf32>
      %42 = arith.mulf %32, %41 : vector<16x32xf32>
      %43 = vector.broadcast %25 : vector<1x32xf32> to vector<16x32xf32>
      %44 = arith.mulf %42, %43 : vector<16x32xf32>
      %45 = vector.broadcast %26 : vector<1x32xf32> to vector<16x32xf32>
      %46 = arith.addf %44, %45 : vector<16x32xf32>
      %c0_31 = arith.constant 0 : index
      %c0_32 = arith.constant 0 : index
      %47 = vector.load %arg9[%c0_31, %c0_32] : memref<16x32xf32, #tpu.memory_space<vmem>>, vector<16x32xf32>
      tpu.vector_store %arg9[%c0_31, %c0_32], %46 {strides = array<i32>} : memref<16x32xf32, #tpu.memory_space<vmem>>, vector<16x32xf32>,
    } else {
    }
    return
  }
  func.func @transform_0(%arg0: i32, %arg1: i32) -> (i32, i32) {
    %c0_i32 = arith.constant 0 : i32
    %c0_i32_0 = arith.constant 0 : i32
    return %arg0, %c0_i32 : i32, i32
  }
  func.func @transform_1(%arg0: i32, %arg1: i32) -> (i32, i32) {
    %c0_i32 = arith.constant 0 : i32
    %c0_i32_0 = arith.constant 0 : i32
    return %c0_i32, %arg1 : i32, i32
  }
  func.func @transform_2(%arg0: i32, %arg1: i32) -> (i32, i32) {
    %c0_i32 = arith.constant 0 : i32
    %c0_i32_0 = arith.constant 0 : i32
    return %c0_i32, %arg1 : i32, i32
  }
  func.func @transform_3(%arg0: i32, %arg1: i32) -> (i32, i32) {
    %c0_i32 = arith.constant 0 : i32
    %c0_i32_0 = arith.constant 0 : i32
    return %arg1, %c0_i32 : i32, i32
  }
  func.func @transform_4(%arg0: i32, %arg1: i32) -> (i32, i32) {
    %c0_i32 = arith.constant 0 : i32
    %c0_i32_0 = arith.constant 0 : i32
    %c0_i32_1 = arith.constant 0 : i32
    return %c0_i32, %c0_i32_0 : i32, i32
  }
  func.func @transform_5(%arg0: i32, %arg1: i32) -> (i32, i32) {
    %c0_i32 = arith.constant 0 : i32
    %c0_i32_0 = arith.constant 0 : i32
    %c0_i32_1 = arith.constant 0 : i32
    return %c0_i32, %c0_i32_0 : i32, i32
  }
  func.func @transform_6(%arg0: i32, %arg1: i32) -> (i32, i32) {
    %c0_i32 = arith.constant 0 : i32
    %c0_i32_0 = arith.constant 0 : i32
    %c0_i32_1 = arith.constant 0 : i32
    return %c0_i32, %c0_i32_0 : i32, i32
  }
  func.func @transform_7(%arg0: i32, %arg1: i32) -> (i32, i32) {
    %c0_i32 = arith.constant 0 : i32
    %c0_i32_0 = arith.constant 0 : i32
    return %arg0, %c0_i32 : i32, i32
  }
}

module attributes {stable_mosaic.version = 11 : i64} {
  func.func @_out_proj_ln_kernel(%arg0: i32, %arg1: memref<16x32xf32, #tpu.memory_space<vmem>>, %arg2: memref<32x32xf32, #tpu.memory_space<vmem>>, %arg3: memref<1x32xf32, #tpu.memory_space<vmem>>, %arg4: memref<16x32xf32, #tpu.memory_space<vmem>>, %arg5: memref<1x32xf32, #tpu.memory_space<vmem>>, %arg6: memref<1x32xf32, #tpu.memory_space<vmem>>, %arg7: memref<16x32xf32, #tpu.memory_space<vmem>>) attributes {dimension_semantics = [#tpu.dimension_semantics<parallel>], iteration_bounds = array<i64: 1>, scalar_prefetch = 0 : i64, scratch_operands = 0 : i64, tpu.core_type = #tpu.core_type<tc>, window_params = [{transform_indices = @transform_0, window_bounds = array<i64: 16, 32>}, {pipeline_mode = #tpu.pipeline_mode<synchronous>, transform_indices = @transform_1, window_bounds = array<i64: 32, 32>}, {pipeline_mode = #tpu.pipeline_mode<synchronous>, transform_indices = @transform_2, window_bounds = array<i64: 1, 32>}, {transform_indices = @transform_3, window_bounds = array<i64: 16, 32>}, {pipeline_mode = #tpu.pipeline_mode<synchronous>, transform_indices = @transform_4, window_bounds = array<i64: 1, 32>}, {pipeline_mode = #tpu.pipeline_mode<synchronous>, transform_indices = @transform_5, window_bounds = array<i64: 1, 32>}, {transform_indices = @transform_6, window_bounds = array<i64: 16, 32>}]} {
    %c0 = arith.constant 0 : index
    %c0_0 = arith.constant 0 : index
    %0 = vector.load %arg1[%c0, %c0_0] : memref<16x32xf32, #tpu.memory_space<vmem>>, vector<16x32xf32>
    %c0_1 = arith.constant 0 : index
    %c0_2 = arith.constant 0 : index
    %1 = vector.load %arg2[%c0_1, %c0_2] : memref<32x32xf32, #tpu.memory_space<vmem>>, vector<32x32xf32>
    %cst = arith.constant dense<0.000000e+00> : vector<16x32xf32>
    %2 = tpu.matmul %0, %1, %cst {dimension_numbers = #tpu.dot_dimension_numbers<[1], [0], [0], [1], [0, 0, 1, 1], [], []>} : vector<16x32xf32>, vector<32x32xf32>, vector<16x32xf32> -> vector<16x32xf32>
    %c0_3 = arith.constant 0 : index
    %c0_4 = arith.constant 0 : index
    %3 = vector.load %arg3[%c0_3, %c0_4] : memref<1x32xf32, #tpu.memory_space<vmem>>, vector<1x32xf32>
    %4 = vector.broadcast %3 : vector<1x32xf32> to vector<16x32xf32>
    %5 = arith.addf %2, %4 : vector<16x32xf32>
    %c0_5 = arith.constant 0 : index
    %c0_6 = arith.constant 0 : index
    %6 = vector.load %arg4[%c0_5, %c0_6] : memref<16x32xf32, #tpu.memory_space<vmem>>, vector<16x32xf32>
    %7 = arith.addf %5, %6 : vector<16x32xf32>
    %c0_7 = arith.constant 0 : index
    %c0_8 = arith.constant 0 : index
    %8 = vector.load %arg5[%c0_7, %c0_8] : memref<1x32xf32, #tpu.memory_space<vmem>>, vector<1x32xf32>
    %c0_9 = arith.constant 0 : index
    %c0_10 = arith.constant 0 : index
    %9 = vector.load %arg6[%c0_9, %c0_10] : memref<1x32xf32, #tpu.memory_space<vmem>>, vector<1x32xf32>
    %cst_11 = arith.constant dense<0.000000e+00> : vector<16xf32>
    %10 = vector.multi_reduction <add>, %7, %cst_11 [1] : vector<16x32xf32> to vector<16xf32>
    %11 = vector.shape_cast %10 : vector<16xf32> to vector<16x1xf32>
    %cst_12 = arith.constant 3.200000e+01 : f32
    %12 = vector.broadcast %cst_12 : f32 to vector<16x1xf32>
    %13 = arith.divf %11, %12 : vector<16x1xf32>
    %14 = vector.broadcast %13 : vector<16x1xf32> to vector<16x32xf32>
    %15 = arith.subf %7, %14 : vector<16x32xf32>
    %16 = arith.mulf %15, %15 : vector<16x32xf32>
    %cst_13 = arith.constant dense<0.000000e+00> : vector<16xf32>
    %17 = vector.multi_reduction <add>, %16, %cst_13 [1] : vector<16x32xf32> to vector<16xf32>
    %18 = vector.shape_cast %17 : vector<16xf32> to vector<16x1xf32>
    %cst_14 = arith.constant 3.200000e+01 : f32
    %19 = vector.broadcast %cst_14 : f32 to vector<16x1xf32>
    %20 = arith.divf %18, %19 : vector<16x1xf32>
    %cst_15 = arith.constant 9.99999974E-6 : f32
    %21 = vector.broadcast %cst_15 : f32 to vector<16x1xf32>
    %22 = arith.addf %20, %21 : vector<16x1xf32>
    %23 = math.rsqrt %22 : vector<16x1xf32>
    %24 = vector.broadcast %23 : vector<16x1xf32> to vector<16x32xf32>
    %25 = arith.mulf %15, %24 : vector<16x32xf32>
    %26 = vector.broadcast %8 : vector<1x32xf32> to vector<16x32xf32>
    %27 = arith.mulf %25, %26 : vector<16x32xf32>
    %28 = vector.broadcast %9 : vector<1x32xf32> to vector<16x32xf32>
    %29 = arith.addf %27, %28 : vector<16x32xf32>
    %c0_16 = arith.constant 0 : index
    %c0_17 = arith.constant 0 : index
    %30 = vector.load %arg7[%c0_16, %c0_17] : memref<16x32xf32, #tpu.memory_space<vmem>>, vector<16x32xf32>
    tpu.vector_store %arg7[%c0_16, %c0_17], %29 {strides = array<i32>} : memref<16x32xf32, #tpu.memory_space<vmem>>, vector<16x32xf32>,
    return
  }
  func.func @transform_0(%arg0: i32) -> (i32, i32) {
    %c0_i32 = arith.constant 0 : i32
    %c0_i32_0 = arith.constant 0 : i32
    return %arg0, %c0_i32 : i32, i32
  }
  func.func @transform_1(%arg0: i32) -> (i32, i32) {
    %c0_i32 = arith.constant 0 : i32
    %c0_i32_0 = arith.constant 0 : i32
    %c0_i32_1 = arith.constant 0 : i32
    return %c0_i32, %c0_i32_0 : i32, i32
  }
  func.func @transform_2(%arg0: i32) -> (i32, i32) {
    %c0_i32 = arith.constant 0 : i32
    %c0_i32_0 = arith.constant 0 : i32
    %c0_i32_1 = arith.constant 0 : i32
    return %c0_i32, %c0_i32_0 : i32, i32
  }
  func.func @transform_3(%arg0: i32) -> (i32, i32) {
    %c0_i32 = arith.constant 0 : i32
    %c0_i32_0 = arith.constant 0 : i32
    return %arg0, %c0_i32 : i32, i32
  }
  func.func @transform_4(%arg0: i32) -> (i32, i32) {
    %c0_i32 = arith.constant 0 : i32
    %c0_i32_0 = arith.constant 0 : i32
    %c0_i32_1 = arith.constant 0 : i32
    return %c0_i32, %c0_i32_0 : i32, i32
  }
  func.func @transform_5(%arg0: i32) -> (i32, i32) {
    %c0_i32 = arith.constant 0 : i32
    %c0_i32_0 = arith.constant 0 : i32
    %c0_i32_1 = arith.constant 0 : i32
    return %c0_i32, %c0_i32_0 : i32, i32
  }
  func.func @transform_6(%arg0: i32) -> (i32, i32) {
    %c0_i32 = arith.constant 0 : i32
    %c0_i32_0 = arith.constant 0 : i32
    return %arg0, %c0_i32 : i32, i32
  }
}

</mosaic_0001>

<llo_original>
// kernel: encoder_layer.5
$region0: #{encoder_layer.5}
  #allocation0 [shape = 'u32[]', space=smem, size = 0x4, offset = 0x4, fixed_abs, tag = 'smem constant byte address 0x4 - core index']
  #allocation1 [shape = 'u32[144,128]{1,0:T(1,128)}', space=vmem, size = 0x12000, scoped, tag = 'internal scratch']
  %s0 = inlined_call_operand.vmem [shape: f32[8,8,8], index: 0, kind: input, shape index: {}]
  %s1 = inlined_call_operand.vmem [shape: f32[8,8,8], index: 1, kind: input, shape index: {}]
  %s2 = inlined_call_operand.vmem [shape: f32[8,8,8], index: 2, kind: input, shape index: {}]
  %s3 = inlined_call_operand.vmem [shape: f32[8,8,8], index: 3, kind: output, shape index: {}]
  %s4 = sld [smem:[#allocation0]]
  $region45: #{encoder_layer.5} parent=0
    _
  %s6 = ssub.s32 1, %s4
  %s7 = scalar_select 0, %s6, %s4
  loop: start=0, step=1, limit=10
  $region2: #{encoder_layer.5} parent=0 // loop_pre_header
    _
  $region3: #{encoder_layer.5} parent=0 // loop_header
    %s9 = sphi 0, %s13
    %p10 = scmp.ge.s32.totalorder %s9, 10
    %s19 = sphi 0, %s21
    %s22 = sphi 0, %s19
    %s23 = sphi 0, %s22
    %s39 = sphi 0, %s23
    %s45 = sphi 0, %s47
    %s48 = sphi 0, %s45
    %s49 = sphi 0, %s48
    %s65 = sphi 0, %s49
    %s71 = sphi 0, %s73
    %s74 = sphi 0, %s71
    %s75 = sphi 0, %s74
    %s91 = sphi 0, %s75
    %s97 = sphi 0, %s99
    %s100 = sphi 0, %s97
    %s101 = sphi 0, %s100
    %s117 = sphi 0, %s101
  $region4: #{encoder_layer.5} parent=0 // loop_header_branch
    %12 = sbr.rel (%p10) target = $region8
  $region5: #{encoder_layer.5} parent=0 // loop_body
    %s14 = ssub.s32 %s9, 1
    %s15 = ssub.s32 %s9, 2
    %s16 = sadd.s32 %s9, 1
    %s17 = ssub.s32 %s9, %s16
    %p18 = scmp.eq.s32.totalorder %s17, 0
    %s20 = sadd.s32 %s19, 1
    %s21 = scalar_select %p18, %s19, %s20
    %p24 = pneg %p18
    %p25 = scmp.eq.s32.totalorder %s9, 7
    %p26 = por %p24, %p25
    %p27 = scmp.ne.s32.totalorder %s19, %s22
    %p28 = scmp.eq.s32.totalorder %s9, 0
    %p29 = por %p27, %p28
    %p30 = scmp.ne.s32.totalorder %s19, %s22
    %p31 = scmp.eq.s32.totalorder %s14, 7
    %p32 = por %p30, %p31
    %p33 = scmp.ne.s32.totalorder %s22, %s23
    %p34 = scmp.eq.s32.totalorder %s14, 0
    %p35 = por %p33, %p34
    %p36 = scmp.ne.s32.totalorder %s22, %s23
    %p37 = scmp.eq.s32.totalorder %s15, 7
    %p38 = por %p36, %p37
    %p40 = scmp.ne.s32.totalorder %s23, %s39
    %p41 = scmp.eq.s32.totalorder %s15, 0
    %p42 = por %p40, %p41
    %s43 = ssub.s32 %s9, %s16
    %p44 = scmp.eq.s32.totalorder %s43, 0
    %s46 = sadd.s32 %s45, 1
    %s47 = scalar_select %p44, %s45, %s46
    %p50 = pneg %p44
    %p51 = scmp.eq.s32.totalorder %s9, 7
    %p52 = por %p50, %p51
    %p53 = scmp.ne.s32.totalorder %s45, %s48
    %p54 = scmp.eq.s32.totalorder %s9, 0
    %p55 = por %p53, %p54
    %p56 = scmp.ne.s32.totalorder %s45, %s48
    %p57 = scmp.eq.s32.totalorder %s14, 7
    %p58 = por %p56, %p57
    %p59 = scmp.ne.s32.totalorder %s48, %s49
    %p60 = scmp.eq.s32.totalorder %s14, 0
    %p61 = por %p59, %p60
    %p62 = scmp.ne.s32.totalorder %s48, %s49
    %p63 = scmp.eq.s32.totalorder %s15, 7
    %p64 = por %p62, %p63
    %p66 = scmp.ne.s32.totalorder %s49, %s65
    %p67 = scmp.eq.s32.totalorder %s15, 0
    %p68 = por %p66, %p67
    %s69 = ssub.s32 %s9, %s16
    %p70 = scmp.eq.s32.totalorder %s69, 0
    %s72 = sadd.s32 %s71, 1
    %s73 = scalar_select %p70, %s71, %s72
    %p76 = pneg %p70
    %p77 = scmp.eq.s32.totalorder %s9, 7
    %p78 = por %p76, %p77
    %p79 = scmp.ne.s32.totalorder %s71, %s74
    %p80 = scmp.eq.s32.totalorder %s9, 0
    %p81 = por %p79, %p80
    %p82 = scmp.ne.s32.totalorder %s71, %s74
    %p83 = scmp.eq.s32.totalorder %s14, 7
    %p84 = por %p82, %p83
    %p85 = scmp.ne.s32.totalorder %s74, %s75
    %p86 = scmp.eq.s32.totalorder %s14, 0
    %p87 = por %p85, %p86
    %p88 = scmp.ne.s32.totalorder %s74, %s75
    %p89 = scmp.eq.s32.totalorder %s15, 7
    %p90 = por %p88, %p89
    %p92 = scmp.ne.s32.totalorder %s75, %s91
    %p93 = scmp.eq.s32.totalorder %s15, 0
    %p94 = por %p92, %p93
    %s95 = ssub.s32 %s9, %s16
    %p96 = scmp.eq.s32.totalorder %s95, 0
    %s98 = sadd.s32 %s97, 1
    %s99 = scalar_select %p96, %s97, %s98
    %p102 = pneg %p96
    %p103 = scmp.eq.s32.totalorder %s9, 7
    %p104 = por %p102, %p103
    %p105 = scmp.ne.s32.totalorder %s97, %s100
    %p106 = scmp.eq.s32.totalorder %s9, 0
    %p107 = por %p105, %p106
    %p108 = scmp.ne.s32.totalorder %s97, %s100
    %p109 = scmp.eq.s32.totalorder %s14, 7
    %p110 = por %p108, %p109
    %p111 = scmp.ne.s32.totalorder %s100, %s101
    %p112 = scmp.eq.s32.totalorder %s14, 0
    %p113 = por %p111, %p112
    %p114 = scmp.ne.s32.totalorder %s100, %s101
    %p115 = scmp.eq.s32.totalorder %s15, 7
    %p116 = por %p114, %p115
    %p118 = scmp.ne.s32.totalorder %s101, %s117
    %p119 = scmp.eq.s32.totalorder %s15, 0
    %p120 = por %p118, %p119
    %p121 = scmp.le.s32.totalorder 1, %s9
    %p122 = scmp.lt.s32.totalorder %s9, 9
    %p123 = pnand %p121, %p122
    %p124 = pneg %p123
    // Predicated region
    $region9: #{encoder_layer.5} parent=5 // pred_check
      _
    $region10: #{encoder_layer.5} parent=5 // pred_check_branch
      %126 = sbr.rel (%p123) target = $region12
    $region11: #{encoder_layer.5} parent=5 // pred_region
      %s127 = ssub.s32 %s9, 1
    $region12: #{encoder_layer.5} parent=5 // pred_fallthru
      _
    %p128 = scmp.lt.s32.totalorder %s9, 8
    // Predicated region
    $region13: #{encoder_layer.5} parent=5 // pred_check
      %p129 = pneg %p128
    $region14: #{encoder_layer.5} parent=5 // pred_check_branch
      %131 = sbr.rel (%p129) target = $region16
    $region15: #{encoder_layer.5} parent=5 // pred_region
      // Predicated region
      $region17: #{encoder_layer.5} parent=15 // pred_check
        %p132 = pneg %p29
      $region18: #{encoder_layer.5} parent=15 // pred_check_branch
        %134 = sbr.rel (%p132) target = $region20
      $region19: #{encoder_layer.5} parent=15 // pred_region
        %p135 = scmp.lt.s32.totalorder %s9, 7
        %s136 = scalar_select %p135, %s9, 7
        %s137 = smul.addr %s136, 8
        %s138 = scalar_lea.vmem %s0, %s137
      $region20: #{encoder_layer.5} parent=15 // pred_fallthru
        _
      // Predicated region
      $region21: #{encoder_layer.5} parent=15 // pred_check
        %p139 = pneg %p55
      $region22: #{encoder_layer.5} parent=15 // pred_check_branch
        %141 = sbr.rel (%p139) target = $region24
      $region23: #{encoder_layer.5} parent=15 // pred_region
        %p142 = scmp.lt.s32.totalorder %s9, 7
        %s143 = scalar_select %p142, %s9, 7
        %s144 = smul.addr %s143, 8
        %s145 = scalar_lea.vmem %s1, %s144
      $region24: #{encoder_layer.5} parent=15 // pred_fallthru
        _
      // Predicated region
      $region25: #{encoder_layer.5} parent=15 // pred_check
        %p146 = pneg %p81
      $region26: #{encoder_layer.5} parent=15 // pred_check_branch
        %148 = sbr.rel (%p146) target = $region28
      $region27: #{encoder_layer.5} parent=15 // pred_region
        %p149 = scmp.lt.s32.totalorder %s9, 7
        %s150 = scalar_select %p149, %s9, 7
        %s151 = smul.addr %s150, 8
        %s152 = scalar_lea.vmem %s2, %s151
      $region28: #{encoder_layer.5} parent=15 // pred_fallthru
        _
    $region16: #{encoder_layer.5} parent=5 // pred_fallthru
      _
    %p153 = scmp.le.s32.totalorder 1, %s9
    %p154 = scmp.lt.s32.totalorder %s9, 9
    %p155 = pnand %p153, %p154
    %p156 = pneg %p155
    // Predicated region
    $region29: #{encoder_layer.5} parent=5 // pred_check
      _
    $region30: #{encoder_layer.5} parent=5 // pred_check_branch
      %158 = sbr.rel (%p155) target = $region32
    $region31: #{encoder_layer.5} parent=5 // pred_region
      %s159 = ssub.s32 %s9, 1
      %p160 = scmp.lt.s32.totalorder %s14, 7
      %s161 = scalar_select %p160, %s14, 7
      %s162 = smul.addr %s161, 8
      %s163 = scalar_lea.vmem %s0, %s162
      %p164 = pneg %p35
      %p165 = pneg %p32
      %p166 = scmp.lt.s32.totalorder %s14, 7
      %s167 = scalar_select %p166, %s14, 7
      %s168 = smul.addr %s167, 8
      %s169 = scalar_lea.vmem %s1, %s168
      %p170 = pneg %p61
      %p171 = pneg %p58
      %p172 = scmp.lt.s32.totalorder %s14, 7
      %s173 = scalar_select %p172, %s14, 7
      %s174 = smul.addr %s173, 8
      %s175 = scalar_lea.vmem %s2, %s174
      %p176 = pneg %p87
      %p177 = pneg %p84
      %p178 = pneg %p113
      %p179 = pneg %p110
      %p180 = scmp.lt.s32.totalorder %s14, 7
      %s181 = scalar_select %p180, %s14, 7
      %s182 = smul.addr %s181, 8
      %s183 = scalar_lea.vmem %s3, %s182
      %p184 = scmp.lt.s32.totalorder %s14, 7
      %s185 = scalar_select %p184, %s14, 7
      %s186 = smul.addr %s185, 8
      %s187 = scalar_lea.vmem %s0, %s186
      %p188 = scmp.lt.s32.totalorder %s14, 7
      %s189 = scalar_select %p188, %s14, 7
      %s190 = smul.addr %s189, 8
      %s191 = scalar_lea.vmem %s1, %s190
      %p192 = scmp.lt.s32.totalorder %s14, 7
      %s193 = scalar_select %p192, %s14, 7
      %s194 = smul.addr %s193, 8
      %s195 = scalar_lea.vmem %s2, %s194
      %p196 = scmp.lt.s32.totalorder %s14, 7
      %s197 = scalar_select %p196, %s14, 7
      %s198 = smul.addr %s197, 8
      %s199 = scalar_lea.vmem %s3, %s198
      %v200 = vld [vmem:[%s187] sm:$0xff]
      %v201 = vld [vmem:[%s191] sm:$0xff]
      %v202 = vld [vmem:[%s195] sm:$0xff]
      %vm203 = vcmask 64512
      %v205 = vsel %vm203, %v200, 0
      %v208 = vsel %vm203, %v201, 0
      %210 = vmatprep.subr.mxu0 0.0
      %211 = vmatpush1.xpose.msra.mxu0 0.0
      %212 = vmatprep.subr.mxu0 0.0
      %213 = vmatpush1.xpose.msra.mxu0 0.0
      %214 = vmatprep.subr.mxu0 0.0
      %215 = vmatpush1.xpose.msra.mxu0 0.0
      %216 = vmatprep.subr.mxu0 0.0
      %217 = vmatpush1.xpose.msra.mxu0 0.0
      %218 = vmatprep.subr.mxu0 0.0
      %219 = vmatpush1.xpose.msra.mxu0 0.0
      %220 = vmatprep.subr.mxu0 0.0
      %221 = vmatpush1.xpose.msra.mxu0 0.0
      %222 = vmatprep.subr.mxu0 0.0
      %223 = vmatpush1.xpose.msra.mxu0 0.0
      %224 = vmatprep.subr.mxu0 0.0
      %225 = vmatpush1.xpose.msra.mxu0 0.0
      %226 = vmatprep.subr.mxu0 0.0
      %227 = vmatpush1.xpose.msra.mxu0 0.0
      %228 = vmatprep.subr.mxu0 0.0
      %229 = vmatpush1.xpose.msra.mxu0 0.0
      %230 = vmatprep.subr.mxu0 0.0
      %231 = vmatpush1.xpose.msra.mxu0 0.0
      %232 = vmatprep.subr.mxu0 0.0
      %233 = vmatpush1.xpose.msra.mxu0 0.0
      %234 = vmatprep.subr.mxu0 0.0
      %235 = vmatpush1.xpose.msra.mxu0 0.0
      %236 = vmatprep.subr.mxu0 0.0
      %237 = vmatpush1.xpose.msra.mxu0 0.0
      %238 = vmatprep.subr.mxu0 0.0
      %239 = vmatpush1.xpose.msra.mxu0 0.0
      %240 = vmatprep.subr.mxu0 0.0
      %241 = vmatpush1.xpose.msra.mxu0 %v208
      %242 = vmatprep.subr.mxu0 0.0
      %243 = vmatpush2.xpose.msra.mxu0 0.0
      %244 = vmatprep.subr.mxu0 0.0
      %245 = vmatpush2.xpose.msra.mxu0 0.0
      %246 = vmatprep.subr.mxu0 0.0
      %247 = vmatpush2.xpose.msra.mxu0 0.0
      %248 = vmatprep.subr.mxu0 0.0
      %249 = vmatpush2.xpose.msra.mxu0 0.0
      %250 = vmatprep.subr.mxu0 0.0
      %251 = vmatpush2.xpose.msra.mxu0 0.0
      %252 = vmatprep.subr.mxu0 0.0
      %253 = vmatpush2.xpose.msra.mxu0 0.0
      %254 = vmatprep.subr.mxu0 0.0
      %255 = vmatpush2.xpose.msra.mxu0 0.0
      %256 = vmatprep.subr.mxu0 0.0
      %257 = vmatpush2.xpose.msra.mxu0 0.0
      %258 = vmatprep.subr.mxu0 0.0
      %259 = vmatpush2.xpose.msra.mxu0 0.0
      %260 = vmatprep.subr.mxu0 0.0
      %261 = vmatpush2.xpose.msra.mxu0 0.0
      %262 = vmatprep.subr.mxu0 0.0
      %263 = vmatpush2.xpose.msra.mxu0 0.0
      %264 = vmatprep.subr.mxu0 0.0
      %265 = vmatpush2.xpose.msra.mxu0 0.0
      %266 = vmatprep.subr.mxu0 0.0
      %267 = vmatpush2.xpose.msra.mxu0 0.0
      %268 = vmatprep.subr.mxu0 0.0
      %269 = vmatpush2.xpose.msra.mxu0 0.0
      %270 = vmatprep.subr.mxu0 0.0
      %271 = vmatpush2.xpose.msra.mxu0 0.0
      %272 = vmatprep.subr.mxu0 0.0
      %273 = vmatpush2.xpose.msra.mxu0 0.0
      %274 = vmatprep.mubr.f32.mxu0 0.0
      %275 = vmatmul.mubr.f32.gmra.mxu0 %v205
      %v276 = vpop.f32.mrf.mxu0
      %v277 = vadd.f32 0.0, %v276
      %v278 = vpop.f32.mrf.mxu0
      %279 = vdwg.mxu0
      %v280 = vrcp.pop 2.828427
      %v281 = vmul.f32 %v277, %v280
      %v282 = vsel %vm203, %v281, -inf
      %283 = vmax.xlane.f32.xlu0 %v282
      %v284 = vpop.xlane.xlu0 %283
      %v285 = vsub.f32 %v281, %v284
      %v286 = vmul.f32 %v285, 1.442695
      %v287 = vpow.pop %v286
      %v288 = vsel %vm203, %v287, 0.0
      %289 = vadd.xlane.f32.xlu0 %v288
      %v290 = vpop.xlane.xlu0 %289
      %v291 = vrcp.pop %v290
      %v292 = vmul.f32 %v287, %v291
      %v294 = vsel %vm203, %v292, 0
      %296 = vmatprep.subr.mxu0 0.0
      %297 = vmatpush1.msra.mxu0 0.0
      %298 = vmatprep.subr.mxu0 0.0
      %299 = vmatpush1.msra.mxu0 0.0
      %300 = vmatprep.subr.mxu0 0.0
      %301 = vmatpush1.msra.mxu0 0.0
      %302 = vmatprep.subr.mxu0 0.0
      %303 = vmatpush1.msra.mxu0 0.0
      %304 = vmatprep.subr.mxu0 0.0
      %305 = vmatpush1.msra.mxu0 0.0
      %306 = vmatprep.subr.mxu0 0.0
      %307 = vmatpush1.msra.mxu0 0.0
      %308 = vmatprep.subr.mxu0 0.0
      %309 = vmatpush1.msra.mxu0 0.0
      %310 = vmatprep.subr.mxu0 0.0
      %311 = vmatpush1.msra.mxu0 0.0
      %312 = vmatprep.subr.mxu0 0.0
      %313 = vmatpush1.msra.mxu0 0.0
      %314 = vmatprep.subr.mxu0 0.0
      %315 = vmatpush1.msra.mxu0 0.0
      %316 = vmatprep.subr.mxu0 0.0
      %317 = vmatpush1.msra.mxu0 0.0
      %318 = vmatprep.subr.mxu0 0.0
      %319 = vmatpush1.msra.mxu0 0.0
      %320 = vmatprep.subr.mxu0 0.0
      %321 = vmatpush1.msra.mxu0 0.0
      %322 = vmatprep.subr.mxu0 0.0
      %323 = vmatpush1.msra.mxu0 0.0
      %324 = vmatprep.subr.mxu0 0.0
      %325 = vmatpush1.msra.mxu0 0.0
      %326 = vmatprep.subr.mxu0 0.0
      %327 = vmatpush1.msra.mxu0 %v202
      %328 = vmatprep.subr.mxu0 0.0
      %329 = vmatpush2.msra.mxu0 0.0
      %330 = vmatprep.subr.mxu0 0.0
      %331 = vmatpush2.msra.mxu0 0.0
      %332 = vmatprep.subr.mxu0 0.0
      %333 = vmatpush2.msra.mxu0 0.0
      %334 = vmatprep.subr.mxu0 0.0
      %335 = vmatpush2.msra.mxu0 0.0
      %336 = vmatprep.subr.mxu0 0.0
      %337 = vmatpush2.msra.mxu0 0.0
      %338 = vmatprep.subr.mxu0 0.0
      %339 = vmatpush2.msra.mxu0 0.0
      %340 = vmatprep.subr.mxu0 0.0
      %341 = vmatpush2.msra.mxu0 0.0
      %342 = vmatprep.subr.mxu0 0.0
      %343 = vmatpush2.msra.mxu0 0.0
      %344 = vmatprep.subr.mxu0 0.0
      %345 = vmatpush2.msra.mxu0 0.0
      %346 = vmatprep.subr.mxu0 0.0
      %347 = vmatpush2.msra.mxu0 0.0
      %348 = vmatprep.subr.mxu0 0.0
      %349 = vmatpush2.msra.mxu0 0.0
      %350 = vmatprep.subr.mxu0 0.0
      %351 = vmatpush2.msra.mxu0 0.0
      %352 = vmatprep.subr.mxu0 0.0
      %353 = vmatpush2.msra.mxu0 0.0
      %354 = vmatprep.subr.mxu0 0.0
      %355 = vmatpush2.msra.mxu0 0.0
      %356 = vmatprep.subr.mxu0 0.0
      %357 = vmatpush2.msra.mxu0 0.0
      %358 = vmatprep.subr.mxu0 0.0
      %359 = vmatpush2.msra.mxu0 0.0
      %360 = vmatprep.mubr.f32.mxu0 0.0
      %361 = vmatmul.mubr.f32.gmra.mxu0 %v294
      %v362 = vpop.f32.mrf.mxu0
      %v363 = vadd.f32 0.0, %v362
      %v364 = vpop.f32.mrf.mxu0
      %365 = vdwg.mxu0
      %366 = vst.msk [vmem:[%s199] sm:$0xff] %vm203, %v363
      %p367 = scmp.lt.s32.totalorder %s14, 7
      %s368 = scalar_select %p367, %s14, 7
      %s369 = smul.addr %s368, 8
      %s370 = scalar_lea.vmem %s3, %s369
      // Predicated region
      $region33: #{encoder_layer.5} parent=31 // pred_check
        %p371 = pneg %p110
      $region34: #{encoder_layer.5} parent=31 // pred_check_branch
        %373 = sbr.rel (%p371) target = $region36
      $region35: #{encoder_layer.5} parent=31 // pred_region
        _
      $region36: #{encoder_layer.5} parent=31 // pred_fallthru
        _
    $region32: #{encoder_layer.5} parent=5 // pred_fallthru
      _
    %p374 = scmp.le.s32.totalorder 2, %s9
    // Predicated region
    $region37: #{encoder_layer.5} parent=5 // pred_check
      %p375 = pneg %p374
    $region38: #{encoder_layer.5} parent=5 // pred_check_branch
      %377 = sbr.rel (%p375) target = $region40
    $region39: #{encoder_layer.5} parent=5 // pred_region
      %s378 = ssub.s32 %s9, 2
      // Predicated region
      $region41: #{encoder_layer.5} parent=39 // pred_check
        %p379 = pneg %p116
      $region42: #{encoder_layer.5} parent=39 // pred_check_branch
        %381 = sbr.rel (%p379) target = $region44
      $region43: #{encoder_layer.5} parent=39 // pred_region
        %p382 = scmp.lt.s32.totalorder %s15, 7
        %s383 = scalar_select %p382, %s15, 7
        %s384 = smul.addr %s383, 8
        %s385 = scalar_lea.vmem %s3, %s384
      $region44: #{encoder_layer.5} parent=39 // pred_fallthru
        _
    $region40: #{encoder_layer.5} parent=5 // pred_fallthru
      _
  $region6: #{encoder_layer.5} parent=0 // loop_footer
    %s13 = sadd.s32 1, %s9
  $region7: #{encoder_layer.5} parent=0 // loop_footer_branch
    %8 = sbr.rel target = $region3
  $region8: #{encoder_layer.5} parent=0 // loop_exit
    _

// kernel: encoder_layer.4
$region0: #{encoder_layer.4}
  #allocation0 [shape = 'u32[]', space=smem, size = 0x4, offset = 0x4, fixed_abs, tag = 'smem constant byte address 0x4 - core index']
  #allocation1 [shape = 'u32[144,128]{1,0:T(1,128)}', space=vmem, size = 0x12000, scoped, tag = 'internal scratch']
  %s0 = inlined_call_operand.vmem [shape: f32[16,32], index: 0, kind: input, shape index: {}]
  %s1 = inlined_call_operand.vmem [shape: f32[32,96], index: 1, kind: input, shape index: {}]
  %s2 = inlined_call_operand.vmem [shape: f32[1,96], index: 2, kind: input, shape index: {}]
  %s3 = inlined_call_operand.vmem [shape: f32[16,96], index: 3, kind: output, shape index: {}]
  %s4 = sld [smem:[#allocation0]]
  $region22: #{encoder_layer.4} parent=0
    _
  %s6 = ssub.s32 1, %s4
  %s7 = scalar_select 0, %s6, %s4
  // Predicated region
  $region2: #{encoder_layer.4} parent=0 // pred_check
    _
  $region3: #{encoder_layer.4} parent=0 // pred_check_branch
    %9 = sbr.rel (0) target = $region5
  $region4: #{encoder_layer.4} parent=0 // pred_region
    _
  $region5: #{encoder_layer.4} parent=0 // pred_fallthru
    _
  // Predicated region
  $region6: #{encoder_layer.4} parent=0 // pred_check
    _
  $region7: #{encoder_layer.4} parent=0 // pred_check_branch
    %11 = sbr.rel (0) target = $region9
  $region8: #{encoder_layer.4} parent=0 // pred_region
    _
  $region9: #{encoder_layer.4} parent=0 // pred_fallthru
    _
  // Predicated region
  $region10: #{encoder_layer.4} parent=0 // pred_check
    _
  $region11: #{encoder_layer.4} parent=0 // pred_check_branch
    %13 = sbr.rel (0) target = $region13
  $region12: #{encoder_layer.4} parent=0 // pred_region
    _
  $region13: #{encoder_layer.4} parent=0 // pred_fallthru
    _
  %v14 = vld [vmem:[%s0] sm:$0xff]
  %v15 = vld [vmem:[%s0 + $0x8] sm:$0xff]
  %v16 = vld [vmem:[%s1] sm:$0xff]
  %v17 = vld [vmem:[%s1 + $0x8] sm:$0xff]
  %v18 = vld [vmem:[%s1 + $0x10] sm:$0xff]
  %v19 = vld [vmem:[%s1 + $0x18] sm:$0xff]
  %v20 = vld [vmem:[%s2] sm:$0x1]
  %v22 = vlaneseq
  %v23 = vshrl.u32 %v22, 7
  %v24 = vsub.s32 0, %v23
  %v25 = vrot.slane %v20, %v24
  %vm27 = vcmask 261120
  %v29 = vsel %vm27, %v14, 0
  %v32 = vsel %vm27, %v15, 0
  %34 = vmatprep.subr.mxu0 0.0
  %35 = vmatpush1.msra.mxu0 0.0
  %36 = vmatprep.subr.mxu0 0.0
  %37 = vmatpush1.msra.mxu0 0.0
  %38 = vmatprep.subr.mxu0 0.0
  %39 = vmatpush1.msra.mxu0 0.0
  %40 = vmatprep.subr.mxu0 0.0
  %41 = vmatpush1.msra.mxu0 0.0
  %42 = vmatprep.subr.mxu0 0.0
  %43 = vmatpush1.msra.mxu0 0.0
  %44 = vmatprep.subr.mxu0 0.0
  %45 = vmatpush1.msra.mxu0 0.0
  %46 = vmatprep.subr.mxu0 0.0
  %47 = vmatpush1.msra.mxu0 0.0
  %48 = vmatprep.subr.mxu0 0.0
  %49 = vmatpush1.msra.mxu0 0.0
  %50 = vmatprep.subr.mxu0 0.0
  %51 = vmatpush1.msra.mxu0 0.0
  %52 = vmatprep.subr.mxu0 0.0
  %53 = vmatpush1.msra.mxu0 0.0
  %54 = vmatprep.subr.mxu0 0.0
  %55 = vmatpush1.msra.mxu0 0.0
  %56 = vmatprep.subr.mxu0 0.0
  %57 = vmatpush1.msra.mxu0 0.0
  %58 = vmatprep.subr.mxu0 0.0
  %59 = vmatpush1.msra.mxu0 %v19
  %60 = vmatprep.subr.mxu0 0.0
  %61 = vmatpush1.msra.mxu0 %v18
  %62 = vmatprep.subr.mxu0 0.0
  %63 = vmatpush1.msra.mxu0 %v17
  %64 = vmatprep.subr.mxu0 0.0
  %65 = vmatpush1.msra.mxu0 %v16
  %66 = vmatprep.subr.mxu0 0.0
  %67 = vmatpush2.msra.mxu0 0.0
  %68 = vmatprep.subr.mxu0 0.0
  %69 = vmatpush2.msra.mxu0 0.0
  %70 = vmatprep.subr.mxu0 0.0
  %71 = vmatpush2.msra.mxu0 0.0
  %72 = vmatprep.subr.mxu0 0.0
  %73 = vmatpush2.msra.mxu0 0.0
  %74 = vmatprep.subr.mxu0 0.0
  %75 = vmatpush2.msra.mxu0 0.0
  %76 = vmatprep.subr.mxu0 0.0
  %77 = vmatpush2.msra.mxu0 0.0
  %78 = vmatprep.subr.mxu0 0.0
  %79 = vmatpush2.msra.mxu0 0.0
  %80 = vmatprep.subr.mxu0 0.0
  %81 = vmatpush2.msra.mxu0 0.0
  %82 = vmatprep.subr.mxu0 0.0
  %83 = vmatpush2.msra.mxu0 0.0
  %84 = vmatprep.subr.mxu0 0.0
  %85 = vmatpush2.msra.mxu0 0.0
  %86 = vmatprep.subr.mxu0 0.0
  %87 = vmatpush2.msra.mxu0 0.0
  %88 = vmatprep.subr.mxu0 0.0
  %89 = vmatpush2.msra.mxu0 0.0
  %90 = vmatprep.subr.mxu0 0.0
  %91 = vmatpush2.msra.mxu0 0.0
  %92 = vmatprep.subr.mxu0 0.0
  %93 = vmatpush2.msra.mxu0 0.0
  %94 = vmatprep.subr.mxu0 0.0
  %95 = vmatpush2.msra.mxu0 0.0
  %96 = vmatprep.subr.mxu0 0.0
  %97 = vmatpush2.msra.mxu0 0.0
  %98 = vmatprep.mubr.f32.mxu0 0.0
  %99 = vmatmul.mubr.f32.gmra.mxu0 %v29
  %v100 = vpop.f32.mrf.mxu0
  %v101 = vadd.f32 %v25, %v100
  %v102 = vpop.f32.mrf.mxu0
  %103 = vmatprep.mubr.f32.mxu0 0.0
  %104 = vmatmul.mubr.f32.gmra.mxu0 %v32
  %v105 = vpop.f32.mrf.mxu0
  %v106 = vadd.f32 %v25, %v105
  %v107 = vpop.f32.mrf.mxu0
  %108 = vdwg.mxu0
  %vm109 = vcmask 785408
  %110 = vst.msk [vmem:[%s3] sm:$0xff] %vm109, %v101
  %111 = vst.msk [vmem:[%s3 + $0x8] sm:$0xff] %vm109, %v106
  // Predicated region
  $region14: #{encoder_layer.4} parent=0 // pred_check
    _
  $region15: #{encoder_layer.4} parent=0 // pred_check_branch
    %113 = sbr.rel (0) target = $region17
  $region16: #{encoder_layer.4} parent=0 // pred_region
    _
  $region17: #{encoder_layer.4} parent=0 // pred_fallthru
    _
  // Predicated region
  $region18: #{encoder_layer.4} parent=0 // pred_check
    _
  $region19: #{encoder_layer.4} parent=0 // pred_check_branch
    %115 = sbr.rel (0) target = $region21
  $region20: #{encoder_layer.4} parent=0 // pred_region
    _
  $region21: #{encoder_layer.4} parent=0 // pred_fallthru
    _

// kernel: encoder_layer.6
$region0: #{encoder_layer.6}
  #allocation0 [shape = 'u32[]', space=smem, size = 0x4, offset = 0x4, fixed_abs, tag = 'smem constant byte address 0x4 - core index']
  #allocation1 [shape = 'u32[144,128]{1,0:T(1,128)}', space=vmem, size = 0x12000, scoped, tag = 'internal scratch']
  %s0 = inlined_call_operand.vmem [shape: f32[16,32], index: 0, kind: input, shape index: {}]
  %s1 = inlined_call_operand.vmem [shape: f32[32,32], index: 1, kind: input, shape index: {}]
  %s2 = inlined_call_operand.vmem [shape: f32[1,32], index: 2, kind: input, shape index: {}]
  %s3 = inlined_call_operand.vmem [shape: f32[16,32], index: 3, kind: input, shape index: {}]
  %s4 = inlined_call_operand.vmem [shape: f32[1,32], index: 4, kind: input, shape index: {}]
  %s5 = inlined_call_operand.vmem [shape: f32[1,32], index: 5, kind: input, shape index: {}]
  %s6 = inlined_call_operand.vmem [shape: f32[16,32], index: 6, kind: output, shape index: {}]
  %s7 = sld [smem:[#allocation0]]
  $region34: #{encoder_layer.6} parent=0
    _
  %s9 = ssub.s32 1, %s7
  %s10 = scalar_select 0, %s9, %s7
  // Predicated region
  $region2: #{encoder_layer.6} parent=0 // pred_check
    _
  $region3: #{encoder_layer.6} parent=0 // pred_check_branch
    %12 = sbr.rel (0) target = $region5
  $region4: #{encoder_layer.6} parent=0 // pred_region
    _
  $region5: #{encoder_layer.6} parent=0 // pred_fallthru
    _
  // Predicated region
  $region6: #{encoder_layer.6} parent=0 // pred_check
    _
  $region7: #{encoder_layer.6} parent=0 // pred_check_branch
    %14 = sbr.rel (0) target = $region9
  $region8: #{encoder_layer.6} parent=0 // pred_region
    _
  $region9: #{encoder_layer.6} parent=0 // pred_fallthru
    _
  // Predicated region
  $region10: #{encoder_layer.6} parent=0 // pred_check
    _
  $region11: #{encoder_layer.6} parent=0 // pred_check_branch
    %16 = sbr.rel (0) target = $region13
  $region12: #{encoder_layer.6} parent=0 // pred_region
    _
  $region13: #{encoder_layer.6} parent=0 // pred_fallthru
    _
  // Predicated region
  $region14: #{encoder_layer.6} parent=0 // pred_check
    _
  $region15: #{encoder_layer.6} parent=0 // pred_check_branch
    %18 = sbr.rel (0) target = $region17
  $region16: #{encoder_layer.6} parent=0 // pred_region
    _
  $region17: #{encoder_layer.6} parent=0 // pred_fallthru
    _
  // Predicated region
  $region18: #{encoder_layer.6} parent=0 // pred_check
    _
  $region19: #{encoder_layer.6} parent=0 // pred_check_branch
    %20 = sbr.rel (0) target = $region21
  $region20: #{encoder_layer.6} parent=0 // pred_region
    _
  $region21: #{encoder_layer.6} parent=0 // pred_fallthru
    _
  // Predicated region
  $region22: #{encoder_layer.6} parent=0 // pred_check
    _
  $region23: #{encoder_layer.6} parent=0 // pred_check_branch
    %22 = sbr.rel (0) target = $region25
  $region24: #{encoder_layer.6} parent=0 // pred_region
    _
  $region25: #{encoder_layer.6} parent=0 // pred_fallthru
    _
  %v23 = vld [vmem:[%s0] sm:$0xff]
  %v24 = vld [vmem:[%s0 + $0x8] sm:$0xff]
  %v25 = vld [vmem:[%s1] sm:$0xff]
  %v26 = vld [vmem:[%s1 + $0x8] sm:$0xff]
  %v27 = vld [vmem:[%s1 + $0x10] sm:$0xff]
  %v28 = vld [vmem:[%s1 + $0x18] sm:$0xff]
  %v29 = vld [vmem:[%s2] sm:$0x1]
  %v31 = vlaneseq
  %v32 = vshrl.u32 %v31, 7
  %v33 = vsub.s32 0, %v32
  %v34 = vrot.slane %v29, %v33
  %vm36 = vcmask 261120
  %v38 = vsel %vm36, %v23, 0
  %v41 = vsel %vm36, %v24, 0
  %43 = vmatprep.subr.mxu0 0.0
  %44 = vmatpush1.msra.mxu0 0.0
  %45 = vmatprep.subr.mxu0 0.0
  %46 = vmatpush1.msra.mxu0 0.0
  %47 = vmatprep.subr.mxu0 0.0
  %48 = vmatpush1.msra.mxu0 0.0
  %49 = vmatprep.subr.mxu0 0.0
  %50 = vmatpush1.msra.mxu0 0.0
  %51 = vmatprep.subr.mxu0 0.0
  %52 = vmatpush1.msra.mxu0 0.0
  %53 = vmatprep.subr.mxu0 0.0
  %54 = vmatpush1.msra.mxu0 0.0
  %55 = vmatprep.subr.mxu0 0.0
  %56 = vmatpush1.msra.mxu0 0.0
  %57 = vmatprep.subr.mxu0 0.0
  %58 = vmatpush1.msra.mxu0 0.0
  %59 = vmatprep.subr.mxu0 0.0
  %60 = vmatpush1.msra.mxu0 0.0
  %61 = vmatprep.subr.mxu0 0.0
  %62 = vmatpush1.msra.mxu0 0.0
  %63 = vmatprep.subr.mxu0 0.0
  %64 = vmatpush1.msra.mxu0 0.0
  %65 = vmatprep.subr.mxu0 0.0
  %66 = vmatpush1.msra.mxu0 0.0
  %67 = vmatprep.subr.mxu0 0.0
  %68 = vmatpush1.msra.mxu0 %v28
  %69 = vmatprep.subr.mxu0 0.0
  %70 = vmatpush1.msra.mxu0 %v27
  %71 = vmatprep.subr.mxu0 0.0
  %72 = vmatpush1.msra.mxu0 %v26
  %73 = vmatprep.subr.mxu0 0.0
  %74 = vmatpush1.msra.mxu0 %v25
  %75 = vmatprep.subr.mxu0 0.0
  %76 = vmatpush2.msra.mxu0 0.0
  %77 = vmatprep.subr.mxu0 0.0
  %78 = vmatpush2.msra.mxu0 0.0
  %79 = vmatprep.subr.mxu0 0.0
  %80 = vmatpush2.msra.mxu0 0.0
  %81 = vmatprep.subr.mxu0 0.0
  %82 = vmatpush2.msra.mxu0 0.0
  %83 = vmatprep.subr.mxu0 0.0
  %84 = vmatpush2.msra.mxu0 0.0
  %85 = vmatprep.subr.mxu0 0.0
  %86 = vmatpush2.msra.mxu0 0.0
  %87 = vmatprep.subr.mxu0 0.0
  %88 = vmatpush2.msra.mxu0 0.0
  %89 = vmatprep.subr.mxu0 0.0
  %90 = vmatpush2.msra.mxu0 0.0
  %91 = vmatprep.subr.mxu0 0.0
  %92 = vmatpush2.msra.mxu0 0.0
  %93 = vmatprep.subr.mxu0 0.0
  %94 = vmatpush2.msra.mxu0 0.0
  %95 = vmatprep.subr.mxu0 0.0
  %96 = vmatpush2.msra.mxu0 0.0
  %97 = vmatprep.subr.mxu0 0.0
  %98 = vmatpush2.msra.mxu0 0.0
  %99 = vmatprep.subr.mxu0 0.0
  %100 = vmatpush2.msra.mxu0 0.0
  %101 = vmatprep.subr.mxu0 0.0
  %102 = vmatpush2.msra.mxu0 0.0
  %103 = vmatprep.subr.mxu0 0.0
  %104 = vmatpush2.msra.mxu0 0.0
  %105 = vmatprep.subr.mxu0 0.0
  %106 = vmatpush2.msra.mxu0 0.0
  %107 = vmatprep.mubr.f32.mxu0 0.0
  %108 = vmatmul.mubr.f32.gmra.mxu0 %v38
  %v109 = vpop.f32.mrf.mxu0
  %v110 = vadd.f32 %v34, %v109
  %v111 = vpop.f32.mrf.mxu0
  %112 = vmatprep.mubr.f32.mxu0 0.0
  %113 = vmatmul.mubr.f32.gmra.mxu0 %v41
  %v114 = vpop.f32.mrf.mxu0
  %v115 = vadd.f32 %v34, %v114
  %v116 = vpop.f32.mrf.mxu0
  %117 = vdwg.mxu0
  %v118 = vld [vmem:[%s3] sm:$0xff]
  %v119 = vld [vmem:[%s3 + $0x8] sm:$0xff]
  %v120 = vadd.f32 %v110, %v118
  %v121 = vadd.f32 %v115, %v119
  %v122 = vld [vmem:[%s4] sm:$0x1]
  %v123 = vld [vmem:[%s5] sm:$0x1]
  %v124 = vsel %vm36, %v120, 0.0
  %125 = vadd.xlane.f32.xlu0 %v124
  %v126 = vpop.xlane.xlu0 %125
  %v127 = vsel %vm36, %v121, 0.0
  %128 = vadd.xlane.f32.xlu0 %v127
  %v129 = vpop.xlane.xlu0 %128
  %v130 = vrcp.pop 32.0
  %v131 = vmul.f32 %v126, %v130
  %v132 = vmul.f32 %v129, %v130
  %v133 = vsub.f32 %v120, %v131
  %v134 = vsub.f32 %v121, %v132
  %v135 = vmul.f32 %v133, %v133
  %v136 = vmul.f32 %v134, %v134
  %v137 = vsel %vm36, %v135, 0.0
  %138 = vadd.xlane.f32.xlu0 %v137
  %v139 = vpop.xlane.xlu0 %138
  %v140 = vsel %vm36, %v136, 0.0
  %141 = vadd.xlane.f32.xlu0 %v140
  %v142 = vpop.xlane.xlu0 %141
  %v143 = vmul.f32 %v139, %v130
  %v144 = vmul.f32 %v142, %v130
  %v145 = vadd.f32 %v143, 1e-05
  %v146 = vadd.f32 %v144, 1e-05
  %v147 = vrsqrt.pop %v145
  %v148 = vrsqrt.pop %v146
  %v149 = vmul.f32 %v133, %v147
  %v150 = vmul.f32 %v134, %v148
  %v152 = vlaneseq
  %v153 = vshrl.u32 %v152, 7
  %v154 = vsub.s32 0, %v153
  %v155 = vrot.slane %v122, %v154
  %v157 = vmul.f32 %v149, %v155
  %v158 = vmul.f32 %v150, %v155
  %v160 = vlaneseq
  %v161 = vshrl.u32 %v160, 7
  %v162 = vsub.s32 0, %v161
  %v163 = vrot.slane %v123, %v162
  %v165 = vadd.f32 %v157, %v163
  %v166 = vadd.f32 %v158, %v163
  %167 = vst.msk [vmem:[%s6] sm:$0xff] %vm36, %v165
  %168 = vst.msk [vmem:[%s6 + $0x8] sm:$0xff] %vm36, %v166
  // Predicated region
  $region26: #{encoder_layer.6} parent=0 // pred_check
    _
  $region27: #{encoder_layer.6} parent=0 // pred_check_branch
    %170 = sbr.rel (0) target = $region29
  $region28: #{encoder_layer.6} parent=0 // pred_region
    _
  $region29: #{encoder_layer.6} parent=0 // pred_fallthru
    _
  // Predicated region
  $region30: #{encoder_layer.6} parent=0 // pred_check
    _
  $region31: #{encoder_layer.6} parent=0 // pred_check_branch
    %172 = sbr.rel (0) target = $region33
  $region32: #{encoder_layer.6} parent=0 // pred_region
    _
  $region33: #{encoder_layer.6} parent=0 // pred_fallthru
    _

// kernel: encoder_layer.7
$region0: #{encoder_layer.7}
  #allocation0 [shape = 'u32[]', space=smem, size = 0x4, offset = 0x4, fixed_abs, tag = 'smem constant byte address 0x4 - core index']
  #allocation1 [shape = 'u32[144,128]{1,0:T(1,128)}', space=vmem, size = 0x12000, scoped, tag = 'internal scratch']
  #allocation2 [shape = 'f32[16,32]{1,0:T(8,128)}', space=vmem, size = 0x2000, scoped, tag = 'scratch operand']
  %s0 = inlined_call_operand.vmem [shape: f32[16,32], index: 0, kind: input, shape index: {}]
  %s1 = inlined_call_operand.vmem [shape: f32[32,64], index: 1, kind: input, shape index: {}]
  %s2 = inlined_call_operand.vmem [shape: f32[1,64], index: 2, kind: input, shape index: {}]
  %s3 = inlined_call_operand.vmem [shape: f32[64,32], index: 3, kind: input, shape index: {}]
  %s4 = inlined_call_operand.vmem [shape: f32[1,32], index: 4, kind: input, shape index: {}]
  %s5 = inlined_call_operand.vmem [shape: f32[1,32], index: 5, kind: input, shape index: {}]
  %s6 = inlined_call_operand.vmem [shape: f32[1,32], index: 6, kind: input, shape index: {}]
  %s7 = inlined_call_operand.hbm [shape: f32[16,32], index: 7, kind: output, shape index: {}]
  %s8 = sld [smem:[#allocation0]]
  $region46: #{encoder_layer.7} parent=0
    _
  %s10 = ssub.s32 1, %s8
  %s11 = scalar_select 0, %s10, %s8
  $region1: #{encoder_layer.7} parent=0
    #allocation3 [shape = 'u8[8192]{0}', space=vmem, size = 0x2000, scoped, tag = 'output window, operand 0, single buffered']
    #allocation4 [shape = 's32[1]{0}', space=sflag, size = 0x4, scoped, tag = 'scoped memory for encoder_layer.7']
    %12 = vsyncpa [#allocation4], 0
    // Predicated region
    $region2: #{encoder_layer.7} parent=1 // pred_check
      _
    $region3: #{encoder_layer.7} parent=1 // pred_check_branch
      %14 = sbr.rel (0) target = $region5
    $region4: #{encoder_layer.7} parent=1 // pred_region
      _
    $region5: #{encoder_layer.7} parent=1 // pred_fallthru
      _
    // Predicated region
    $region6: #{encoder_layer.7} parent=1 // pred_check
      _
    $region7: #{encoder_layer.7} parent=1 // pred_check_branch
      %16 = sbr.rel (0) target = $region9
    $region8: #{encoder_layer.7} parent=1 // pred_region
      _
    $region9: #{encoder_layer.7} parent=1 // pred_fallthru
      _
    // Predicated region
    $region10: #{encoder_layer.7} parent=1 // pred_check
      _
    $region11: #{encoder_layer.7} parent=1 // pred_check_branch
      %18 = sbr.rel (0) target = $region13
    $region12: #{encoder_layer.7} parent=1 // pred_region
      _
    $region13: #{encoder_layer.7} parent=1 // pred_fallthru
      _
    // Predicated region
    $region14: #{encoder_layer.7} parent=1 // pred_check
      _
    $region15: #{encoder_layer.7} parent=1 // pred_check_branch
      %20 = sbr.rel (0) target = $region17
    $region16: #{encoder_layer.7} parent=1 // pred_region
      _
    $region17: #{encoder_layer.7} parent=1 // pred_fallthru
      _
    // Predicated region
    $region18: #{encoder_layer.7} parent=1 // pred_check
      _
    $region19: #{encoder_layer.7} parent=1 // pred_check_branch
      %22 = sbr.rel (0) target = $region21
    $region20: #{encoder_layer.7} parent=1 // pred_region
      _
    $region21: #{encoder_layer.7} parent=1 // pred_fallthru
      _
    // Predicated region
    $region22: #{encoder_layer.7} parent=1 // pred_check
      _
    $region23: #{encoder_layer.7} parent=1 // pred_check_branch
      %24 = sbr.rel (0) target = $region25
    $region24: #{encoder_layer.7} parent=1 // pred_region
      _
    $region25: #{encoder_layer.7} parent=1 // pred_fallthru
      _
    // Predicated region
    $region26: #{encoder_layer.7} parent=1 // pred_check
      _
    $region27: #{encoder_layer.7} parent=1 // pred_check_branch
      %26 = sbr.rel (0) target = $region29
    $region28: #{encoder_layer.7} parent=1 // pred_region
      _
    $region29: #{encoder_layer.7} parent=1 // pred_fallthru
      _
    %p27 = scmp.eq.s32.totalorder 0, 0
    // Predicated region
    $region30: #{encoder_layer.7} parent=1 // pred_check
      %p28 = pneg %p27
    $region31: #{encoder_layer.7} parent=1 // pred_check_branch
      %30 = sbr.rel (%p28) target = $region33
    $region32: #{encoder_layer.7} parent=1 // pred_region
      %vm31 = vcmask 261120
      %32 = vst.msk [vmem:[#allocation2] sm:$0xff] %vm31, 0.0
      %33 = vst.msk [vmem:[#allocation2 + $0x8] sm:$0xff] %vm31, 0.0
    $region33: #{encoder_layer.7} parent=1 // pred_fallthru
      _
    %v34 = vld [vmem:[%s0] sm:$0xff]
    %v35 = vld [vmem:[%s0 + $0x8] sm:$0xff]
    %v36 = vld [vmem:[%s1] sm:$0xff]
    %v37 = vld [vmem:[%s1 + $0x8] sm:$0xff]
    %v38 = vld [vmem:[%s1 + $0x10] sm:$0xff]
    %v39 = vld [vmem:[%s1 + $0x18] sm:$0xff]
    %v40 = vld [vmem:[%s2] sm:$0x1]
    %v42 = vlaneseq
    %v43 = vshrl.u32 %v42, 7
    %v44 = vsub.s32 0, %v43
    %v45 = vrot.slane %v40, %v44
    %vm47 = vcmask 261120
    %v49 = vsel %vm47, %v34, 0
    %v52 = vsel %vm47, %v35, 0
    %54 = vmatprep.subr.mxu0 0.0
    %55 = vmatpush1.msra.mxu0 0.0
    %56 = vmatprep.subr.mxu0 0.0
    %57 = vmatpush1.msra.mxu0 0.0
    %58 = vmatprep.subr.mxu0 0.0
    %59 = vmatpush1.msra.mxu0 0.0
    %60 = vmatprep.subr.mxu0 0.0
    %61 = vmatpush1.msra.mxu0 0.0
    %62 = vmatprep.subr.mxu0 0.0
    %63 = vmatpush1.msra.mxu0 0.0
    %64 = vmatprep.subr.mxu0 0.0
    %65 = vmatpush1.msra.mxu0 0.0
    %66 = vmatprep.subr.mxu0 0.0
    %67 = vmatpush1.msra.mxu0 0.0
    %68 = vmatprep.subr.mxu0 0.0
    %69 = vmatpush1.msra.mxu0 0.0
    %70 = vmatprep.subr.mxu0 0.0
    %71 = vmatpush1.msra.mxu0 0.0
    %72 = vmatprep.subr.mxu0 0.0
    %73 = vmatpush1.msra.mxu0 0.0
    %74 = vmatprep.subr.mxu0 0.0
    %75 = vmatpush1.msra.mxu0 0.0
    %76 = vmatprep.subr.mxu0 0.0
    %77 = vmatpush1.msra.mxu0 0.0
    %78 = vmatprep.subr.mxu0 0.0
    %79 = vmatpush1.msra.mxu0 %v39
    %80 = vmatprep.subr.mxu0 0.0
    %81 = vmatpush1.msra.mxu0 %v38
    %82 = vmatprep.subr.mxu0 0.0
    %83 = vmatpush1.msra.mxu0 %v37
    %84 = vmatprep.subr.mxu0 0.0
    %85 = vmatpush1.msra.mxu0 %v36
    %86 = vmatprep.subr.mxu0 0.0
    %87 = vmatpush2.msra.mxu0 0.0
    %88 = vmatprep.subr.mxu0 0.0
    %89 = vmatpush2.msra.mxu0 0.0
    %90 = vmatprep.subr.mxu0 0.0
    %91 = vmatpush2.msra.mxu0 0.0
    %92 = vmatprep.subr.mxu0 0.0
    %93 = vmatpush2.msra.mxu0 0.0
    %94 = vmatprep.subr.mxu0 0.0
    %95 = vmatpush2.msra.mxu0 0.0
    %96 = vmatprep.subr.mxu0 0.0
    %97 = vmatpush2.msra.mxu0 0.0
    %98 = vmatprep.subr.mxu0 0.0
    %99 = vmatpush2.msra.mxu0 0.0
    %100 = vmatprep.subr.mxu0 0.0
    %101 = vmatpush2.msra.mxu0 0.0
    %102 = vmatprep.subr.mxu0 0.0
    %103 = vmatpush2.msra.mxu0 0.0
    %104 = vmatprep.subr.mxu0 0.0
    %105 = vmatpush2.msra.mxu0 0.0
    %106 = vmatprep.subr.mxu0 0.0
    %107 = vmatpush2.msra.mxu0 0.0
    %108 = vmatprep.subr.mxu0 0.0
    %109 = vmatpush2.msra.mxu0 0.0
    %110 = vmatprep.subr.mxu0 0.0
    %111 = vmatpush2.msra.mxu0 0.0
    %112 = vmatprep.subr.mxu0 0.0
    %113 = vmatpush2.msra.mxu0 0.0
    %114 = vmatprep.subr.mxu0 0.0
    %115 = vmatpush2.msra.mxu0 0.0
    %116 = vmatprep.subr.mxu0 0.0
    %117 = vmatpush2.msra.mxu0 0.0
    %118 = vmatprep.mubr.f32.mxu0 0.0
    %119 = vmatmul.mubr.f32.gmra.mxu0 %v49
    %v120 = vpop.f32.mrf.mxu0
    %v121 = vadd.f32 %v45, %v120
    %v122 = vpop.f32.mrf.mxu0
    %123 = vmatprep.mubr.f32.mxu0 0.0
    %124 = vmatmul.mubr.f32.gmra.mxu0 %v52
    %v125 = vpop.f32.mrf.mxu0
    %v126 = vadd.f32 %v45, %v125
    %v127 = vpop.f32.mrf.mxu0
    %128 = vdwg.mxu0
    %v129 = vmax.f32 %v121, 0.0
    %v130 = vmax.f32 %v126, 0.0
    %v131 = vld [vmem:[#allocation2] sm:$0xff]
    %v132 = vld [vmem:[#allocation2 + $0x8] sm:$0xff]
    %v133 = vld [vmem:[%s3] sm:$0xff]
    %v134 = vld [vmem:[%s3 + $0x8] sm:$0xff]
    %v135 = vld [vmem:[%s3 + $0x10] sm:$0xff]
    %v136 = vld [vmem:[%s3 + $0x18] sm:$0xff]
    %v137 = vld [vmem:[%s3 + $0x20] sm:$0xff]
    %v138 = vld [vmem:[%s3 + $0x28] sm:$0xff]
    %v139 = vld [vmem:[%s3 + $0x30] sm:$0xff]
    %v140 = vld [vmem:[%s3 + $0x38] sm:$0xff]
    %vm141 = vcmask 523264
    %v143 = vsel %vm141, %v129, 0
    %v146 = vsel %vm141, %v130, 0
    %148 = vmatprep.subr.mxu0 0.0
    %149 = vmatpush1.msra.mxu0 0.0
    %150 = vmatprep.subr.mxu0 0.0
    %151 = vmatpush1.msra.mxu0 0.0
    %152 = vmatprep.subr.mxu0 0.0
    %153 = vmatpush1.msra.mxu0 0.0
    %154 = vmatprep.subr.mxu0 0.0
    %155 = vmatpush1.msra.mxu0 0.0
    %156 = vmatprep.subr.mxu0 0.0
    %157 = vmatpush1.msra.mxu0 0.0
    %158 = vmatprep.subr.mxu0 0.0
    %159 = vmatpush1.msra.mxu0 0.0
    %160 = vmatprep.subr.mxu0 0.0
    %161 = vmatpush1.msra.mxu0 0.0
    %162 = vmatprep.subr.mxu0 0.0
    %163 = vmatpush1.msra.mxu0 0.0
    %164 = vmatprep.subr.mxu0 0.0
    %165 = vmatpush1.msra.mxu0 %v140
    %166 = vmatprep.subr.mxu0 0.0
    %167 = vmatpush1.msra.mxu0 %v139
    %168 = vmatprep.subr.mxu0 0.0
    %169 = vmatpush1.msra.mxu0 %v138
    %170 = vmatprep.subr.mxu0 0.0
    %171 = vmatpush1.msra.mxu0 %v137
    %172 = vmatprep.subr.mxu0 0.0
    %173 = vmatpush1.msra.mxu0 %v136
    %174 = vmatprep.subr.mxu0 0.0
    %175 = vmatpush1.msra.mxu0 %v135
    %176 = vmatprep.subr.mxu0 0.0
    %177 = vmatpush1.msra.mxu0 %v134
    %178 = vmatprep.subr.mxu0 0.0
    %179 = vmatpush1.msra.mxu0 %v133
    %180 = vmatprep.subr.mxu0 0.0
    %181 = vmatpush2.msra.mxu0 0.0
    %182 = vmatprep.subr.mxu0 0.0
    %183 = vmatpush2.msra.mxu0 0.0
    %184 = vmatprep.subr.mxu0 0.0
    %185 = vmatpush2.msra.mxu0 0.0
    %186 = vmatprep.subr.mxu0 0.0
    %187 = vmatpush2.msra.mxu0 0.0
    %188 = vmatprep.subr.mxu0 0.0
    %189 = vmatpush2.msra.mxu0 0.0
    %190 = vmatprep.subr.mxu0 0.0
    %191 = vmatpush2.msra.mxu0 0.0
    %192 = vmatprep.subr.mxu0 0.0
    %193 = vmatpush2.msra.mxu0 0.0
    %194 = vmatprep.subr.mxu0 0.0
    %195 = vmatpush2.msra.mxu0 0.0
    %196 = vmatprep.subr.mxu0 0.0
    %197 = vmatpush2.msra.mxu0 0.0
    %198 = vmatprep.subr.mxu0 0.0
    %199 = vmatpush2.msra.mxu0 0.0
    %200 = vmatprep.subr.mxu0 0.0
    %201 = vmatpush2.msra.mxu0 0.0
    %202 = vmatprep.subr.mxu0 0.0
    %203 = vmatpush2.msra.mxu0 0.0
    %204 = vmatprep.subr.mxu0 0.0
    %205 = vmatpush2.msra.mxu0 0.0
    %206 = vmatprep.subr.mxu0 0.0
    %207 = vmatpush2.msra.mxu0 0.0
    %208 = vmatprep.subr.mxu0 0.0
    %209 = vmatpush2.msra.mxu0 0.0
    %210 = vmatprep.subr.mxu0 0.0
    %211 = vmatpush2.msra.mxu0 0.0
    %212 = vmatprep.mubr.f32.mxu0 0.0
    %213 = vmatmul.mubr.f32.gmra.mxu0 %v143
    %v214 = vpop.f32.mrf.mxu0
    %v215 = vadd.f32 0.0, %v214
    %v216 = vpop.f32.mrf.mxu0
    %217 = vmatprep.mubr.f32.mxu0 0.0
    %218 = vmatmul.mubr.f32.gmra.mxu0 %v146
    %v219 = vpop.f32.mrf.mxu0
    %v220 = vadd.f32 0.0, %v219
    %v221 = vpop.f32.mrf.mxu0
    %222 = vdwg.mxu0
    %v223 = vadd.f32 %v131, %v215
    %v224 = vadd.f32 %v132, %v220
    %225 = vst.msk [vmem:[#allocation2] sm:$0xff] %vm47, %v223
    %226 = vst.msk [vmem:[#allocation2 + $0x8] sm:$0xff] %vm47, %v224
    // Predicated region
    $region34: #{encoder_layer.7} parent=1 // pred_check
      %p227 = pneg %p27
    $region35: #{encoder_layer.7} parent=1 // pred_check_branch
      %229 = sbr.rel (%p227) target = $region37
    $region36: #{encoder_layer.7} parent=1 // pred_region
      %v230 = vld [vmem:[#allocation2] sm:$0xff]
      %v231 = vld [vmem:[#allocation2 + $0x8] sm:$0xff]
      %v232 = vld [vmem:[%s4] sm:$0x1]
      %v234 = vlaneseq
      %v235 = vshrl.u32 %v234, 7
      %v236 = vsub.s32 0, %v235
      %v237 = vrot.slane %v232, %v236
      %v239 = vadd.f32 %v230, %v237
      %v240 = vadd.f32 %v231, %v237
      %v241 = vld [vmem:[%s0] sm:$0xff]
      %v242 = vld [vmem:[%s0 + $0x8] sm:$0xff]
      %v243 = vadd.f32 %v239, %v241
      %v244 = vadd.f32 %v240, %v242
      %v245 = vld [vmem:[%s5] sm:$0x1]
      %v246 = vld [vmem:[%s6] sm:$0x1]
      %v247 = vsel %vm47, %v243, 0.0
      %248 = vadd.xlane.f32.xlu0 %v247
      %v249 = vpop.xlane.xlu0 %248
      %v250 = vsel %vm47, %v244, 0.0
      %251 = vadd.xlane.f32.xlu0 %v250
      %v252 = vpop.xlane.xlu0 %251
      %v253 = vrcp.pop 32.0
      %v254 = vmul.f32 %v249, %v253
      %v255 = vmul.f32 %v252, %v253
      %v256 = vsub.f32 %v243, %v254
      %v257 = vsub.f32 %v244, %v255
      %v258 = vmul.f32 %v256, %v256
      %v259 = vmul.f32 %v257, %v257
      %v260 = vsel %vm47, %v258, 0.0
      %261 = vadd.xlane.f32.xlu0 %v260
      %v262 = vpop.xlane.xlu0 %261
      %v263 = vsel %vm47, %v259, 0.0
      %264 = vadd.xlane.f32.xlu0 %v263
      %v265 = vpop.xlane.xlu0 %264
      %v266 = vmul.f32 %v262, %v253
      %v267 = vmul.f32 %v265, %v253
      %v268 = vadd.f32 %v266, 1e-05
      %v269 = vadd.f32 %v267, 1e-05
      %v270 = vrsqrt.pop %v268
      %v271 = vrsqrt.pop %v269
      %v272 = vmul.f32 %v256, %v270
      %v273 = vmul.f32 %v257, %v271
      %v275 = vlaneseq
      %v276 = vshrl.u32 %v275, 7
      %v277 = vsub.s32 0, %v276
      %v278 = vrot.slane %v245, %v277
      %v280 = vmul.f32 %v272, %v278
      %v281 = vmul.f32 %v273, %v278
      %v283 = vlaneseq
      %v284 = vshrl.u32 %v283, 7
      %v285 = vsub.s32 0, %v284
      %v286 = vrot.slane %v246, %v285
      %v288 = vadd.f32 %v280, %v286
      %v289 = vadd.f32 %v281, %v286
      %290 = vst.msk [vmem:[#allocation3] sm:$0xff] %vm47, %v288
      %291 = vst.msk [vmem:[#allocation3 + $0x8] sm:$0xff] %vm47, %v289
    $region37: #{encoder_layer.7} parent=1 // pred_fallthru
      _
    // Predicated region
    $region38: #{encoder_layer.7} parent=1 // pred_check
      _
    $region39: #{encoder_layer.7} parent=1 // pred_check_branch
      %293 = sbr.rel (0) target = $region41
    $region40: #{encoder_layer.7} parent=1 // pred_region
      %s295 = ssub.s32 256, 256
      %296 = vsyncadd [#allocation4], %s295
      %s297 = sshll.u32 [#allocation3], 4
      %s298 = int_to_ptr.vmem [resolvable:$true] %s297
      %303 = dma.vmem_to_hbm [thread:$0]  %s298, 256, %s7, [#allocation4], 128, 128, 8
    $region41: #{encoder_layer.7} parent=1 // pred_fallthru
      _
    // Predicated region
    $region42: #{encoder_layer.7} parent=1 // pred_check
      _
    $region43: #{encoder_layer.7} parent=1 // pred_check_branch
      %305 = sbr.rel (0) target = $region45
    $region44: #{encoder_layer.7} parent=1 // pred_region
      %306 = dma.done [#allocation4], 256
    $region45: #{encoder_layer.7} parent=1 // pred_fallthru
      _
    %307 = vsyncpa [#allocation4], 1

</llo_original>
